<compile_context>
chip_gen: v5e
topology: v5e:2x2
jax: 0.10.0
libtpu: 0.0.40
codegen_flags: <defaults>
</compile_context>

<pallas_src>
import math
import jax
import jax.numpy as jnp
from jax import lax
from jax.experimental import pallas as pl
from jax.experimental.pallas import tpu as pltpu

# ----------------------------- configuration -----------------------------
IMG_C = 3
IMG_H = 16
IMG_W = 16
FEAT_C = 32                                   # backbone output channels
FEAT_STRIDE = 2                               # backbone stride (3x3 stride-2 conv)
FEAT_H = (IMG_H + 2 - 3) // FEAT_STRIDE + 1   # 8
FEAT_W = (IMG_W + 2 - 3) // FEAT_STRIDE + 1   # 8
HWPOS = FEAT_H * FEAT_W                       # 64 spatial positions / image
NUM_ANCHORS = 3
ANCHOR_SIZES = (4.0, 8.0, 16.0)
TOPK_PROPOSALS = 8
POOLED = 2                                    # ROI pooled spatial size
NUM_CLASSES = 4                               # foreground classes
PIXEL_MEAN = (103.53, 116.28, 123.675)
PIXEL_STD = (57.375, 57.12, 58.395)
SCALE_CLAMP = math.log(1000.0 / 16)           # detectron2 Box2BoxTransform clamp
ROI_BOX_WEIGHTS = (10.0, 10.0, 5.0, 5.0)      # detectron2 ROI-head box weights

IM2COL_C = 9 * IMG_C                          # 27 backbone im2col channels
RPN_PAD = 128                                 # fused RPN head width (3 + 12, padded)
HID_PAD = 128                                 # ROI hidden width (64, padded)
ROI_PAD = 128                                 # ROI prediction width (5 + 16, padded)

assert FEAT_W & (FEAT_W - 1) == 0 and FEAT_H & (FEAT_H - 1) == 0
_LOG2_FW = FEAT_W.bit_length() - 1            # for cheap bit-op index decode


# ----------------------------- Pallas kernels -----------------------------
def _backbone_rpn_fused_kernel(x_ref, bbw_ref, bbb_ref, rcw_ref, rcb_ref,
                               rhw_ref, rhb_ref, feat_ref, rpn_ref):
    """Backbone conv + RPN 3x3 conv + fused (obj|delta) heads in one kernel.

    x_ref   : (N*HWPOS, 27) bf16   im2col'd, mean-padded raw image (norm folded)
    bbw_ref : (27, FEAT_C) bf16    bbb_ref: (1, FEAT_C) f32
    rcw_ref : (9, FEAT_C, FEAT_C) bf16   rcb_ref: (1, FEAT_C) f32
    rhw_ref : (FEAT_C, RPN_PAD) bf16     rhb_ref: (1, RPN_PAD) f32
    feat_ref: (N*HWPOS, FEAT_C) bf16   (compact 8 KiB writeback for ROI kernel)
    rpn_ref : (N*HWPOS, RPN_PAD) f32   (lane-dense single store)
    """
    total = x_ref.shape[0]                                 # N * HWPOS

    # ---- backbone: one (total, 27) x (27, 32) matmul ----
    f = jnp.dot(x_ref[...], bbw_ref[...], preferred_element_type=jnp.float32)
    feat_f32 = jnp.maximum(f + bbb_ref[...], 0.0)          # (total, FEAT_C) f32
    feat_ref[...] = feat_f32.astype(feat_ref.dtype)

    # ---- RPN 3x3 conv over the flat feature map ----
    # For tap (di, dj) the needed input row is (current row + off); the halo is
    # handled by masking rows whose (i, j) would fall outside the image, so the
    # roll wrap-around never touches a valid row.
    row = lax.broadcasted_iota(jnp.int32, (total, 1), 0)
    jj = jnp.bitwise_and(row, FEAT_W - 1)                              # j index
    ii = jnp.bitwise_and(jnp.right_shift(row, _LOG2_FW), FEAT_H - 1)   # i index

    acc = jnp.zeros((total, FEAT_C), jnp.float32)
    for di in range(3):
        for dj in range(3):
            off = (di - 1) * FEAT_W + (dj - 1)
            if off == 0:
                src = feat_f32
            else:
                src = pltpu.roll(feat_f32, shift=(-off) % total, axis=0)
            conds = []
            if di == 0:
                conds.append(ii >= 1)
            if di == 2:
                conds.append(ii <= FEAT_H - 2)
            if dj == 0:
                conds.append(jj >= 1)
            if dj == 2:
                conds.append(jj <= FEAT_W - 2)
            if conds:
                valid = conds[0]
                for c in conds[1:]:
                    valid = valid & c
                src = jnp.where(valid, src, 0.0)
            acc = acc + jnp.dot(src.astype(jnp.bfloat16), rcw_ref[di * 3 + dj],
                                preferred_element_type=jnp.float32)

    rpn_feat = jnp.maximum(acc + rcb_ref[...], 0.0).astype(jnp.bfloat16)

    # ---- fused (objectness | deltas) heads -> one lane-dense store ----
    head = jnp.dot(rpn_feat, rhw_ref[...], preferred_element_type=jnp.float32)
    rpn_ref[...] = head + rhb_ref[...]


def _roi_pool_head_fused_kernel(sel_ref, feat_ref, w1_ref, b1_ref, w2_ref, b2_ref,
                                w3_ref, b3_ref, o_ref):
    """ROI pooling (one-hot gather matmuls) + fc1 -> fc2 -> (cls|box), fused.

    sel_ref : (POOLED*POOLED, M, N*HWPOS) bf16  one-hot bin-sample selectors
    feat_ref: (N*HWPOS, FEAT_C) bf16            flat backbone feature map
    w1/w2/w3: (128, 128) bf16   b1/b2/b3: (1, 128) f32   o_ref: (M, 128) f32
    """
    m = sel_ref.shape[1]
    feat = feat_ref[...]                                     # (total, FEAT_C) bf16

    # pooled @ W1 == sum_s (sel_s @ feat) @ W1[s*C:(s+1)*C]  -> no concat needed
    acc = jnp.zeros((m, HID_PAD), jnp.float32)
    for s in range(POOLED * POOLED):
        part = jnp.dot(sel_ref[s], feat, preferred_element_type=jnp.float32)
        acc = acc + jnp.dot(part.astype(jnp.bfloat16),
                            w1_ref[s * FEAT_C:(s + 1) * FEAT_C, :],
                            preferred_element_type=jnp.float32)
    h1 = jnp.maximum(acc + b1_ref[...], 0.0).astype(jnp.bfloat16)
    h2 = jnp.dot(h1, w2_ref[...], preferred_element_type=jnp.float32) + b2_ref[...]
    h2 = jnp.maximum(h2, 0.0).astype(jnp.bfloat16)
    out = jnp.dot(h2, w3_ref[...], preferred_element_type=jnp.float32) + b3_ref[...]
    o_ref[...] = out


# ----------------------------- pallas_call wrappers -----------------------------
def _spec(shape):
    """Full-array VMEM block for a single-step grid."""
    zeros = (0,) * len(shape)
    return pl.BlockSpec(tuple(shape), lambda n: zeros)


def backbone_rpn_fused(x_cols, kp):
    total = x_cols.shape[0]
    out_shapes = (
        jax.ShapeDtypeStruct((total, FEAT_C), jnp.bfloat16),
        jax.ShapeDtypeStruct((total, RPN_PAD), jnp.float32),
    )
    ins = (x_cols, kp["bb_w"], kp["bb_b"], kp["rpn_conv_w"], kp["rpn_conv_b"],
           kp["rpn_head_w"], kp["rpn_head_b"])
    return pl.pallas_call(
        _backbone_rpn_fused_kernel,
        out_shape=out_shapes,
        grid=(1,),                              # single step; no megacore split
        in_specs=[_spec(a.shape) for a in ins],
        out_specs=tuple(_spec(s.shape) for s in out_shapes),
    )(*ins)


def roi_pool_head_fused(sel, feat_flat, kp):
    m = sel.shape[1]
    ins = (sel, feat_flat, kp["fc1_w"], kp["fc1_b"], kp["fc2_w"], kp["fc2_b"],
           kp["pred_w"], kp["pred_b"])
    return pl.pallas_call(
        _roi_pool_head_fused_kernel,
        out_shape=jax.ShapeDtypeStruct((m, ROI_PAD), jnp.float32),
        grid=(1,),
        in_specs=[_spec(a.shape) for a in ins],
        out_specs=_spec((m, ROI_PAD)),
    )(*ins)


# ----------------------------- box utilities (JAX glue) -----------------------------
def apply_deltas(boxes, deltas, weights=(1.0, 1.0, 1.0, 1.0)):
    wx, wy, ww, wh = weights
    w = boxes[..., 2] - boxes[..., 0]
    h = boxes[..., 3] - boxes[..., 1]
    cx = boxes[..., 0] + 0.5 * w
    cy = boxes[..., 1] + 0.5 * h
    dx = deltas[..., 0] / wx
    dy = deltas[..., 1] / wy
    dw = jnp.minimum(deltas[..., 2] / ww, SCALE_CLAMP)
    dh = jnp.minimum(deltas[..., 3] / wh, SCALE_CLAMP)
    pcx = dx * w + cx
    pcy = dy * h + cy
    pw = jnp.exp(dw) * w
    ph = jnp.exp(dh) * h
    return jnp.stack(
        [pcx - 0.5 * pw, pcy - 0.5 * ph, pcx + 0.5 * pw, pcy + 0.5 * ph], axis=-1)


def clip_boxes(boxes, h, w):
    x1 = jnp.clip(boxes[..., 0], 0.0, w)
    y1 = jnp.clip(boxes[..., 1], 0.0, h)
    x2 = jnp.clip(boxes[..., 2], 0.0, w)
    y2 = jnp.clip(boxes[..., 3], 0.0, h)
    return jnp.stack([x1, y1, x2, y2], axis=-1)


def make_anchors(Hf, Wf, stride, sizes):
    ys = (jnp.arange(Hf, dtype=jnp.float32) + 0.5) * stride
    xs = (jnp.arange(Wf, dtype=jnp.float32) + 0.5) * stride
    cy, cx = jnp.meshgrid(ys, xs, indexing="ij")
    cy = cy[..., None]
    cx = cx[..., None]
    s = jnp.asarray(sizes, dtype=jnp.float32)[None, None, :]
    anchors = jnp.stack([cx - s / 2, cy - s / 2, cx + s / 2, cy + s / 2], axis=-1)
    return anchors.reshape(Hf * Wf * len(sizes), 4)


# ----------------------------- parameters -----------------------------
def init_params():
    def nrm(key, shape, scale=0.05):
        return scale * jax.random.normal(key, shape, dtype=jnp.float32)

    keys = jax.random.split(jax.random.PRNGKey(42), 12)
    return {
        "bb_w": nrm(keys[0], (3, 3, IMG_C, FEAT_C)),
        "bb_b": jnp.zeros((FEAT_C,), jnp.float32),
        "rpn_conv_w": nrm(keys[1], (3, 3, FEAT_C, FEAT_C)),
        "rpn_conv_b": jnp.zeros((FEAT_C,), jnp.float32),
        "rpn_obj_w": nrm(keys[2], (FEAT_C, NUM_ANCHORS)),
        "rpn_obj_b": jnp.zeros((NUM_ANCHORS,), jnp.float32),
        "rpn_del_w": nrm(keys[3], (FEAT_C, 4 * NUM_ANCHORS), scale=0.01),
        "rpn_del_b": jnp.zeros((4 * NUM_ANCHORS,), jnp.float32),
        "fc1_w": nrm(keys[4], (POOLED * POOLED * FEAT_C, 64)),
        "fc1_b": jnp.zeros((64,), jnp.float32),
        "fc2_w": nrm(keys[5], (64, 64)),
        "fc2_b": jnp.zeros((64,), jnp.float32),
        "cls_w": nrm(keys[6], (64, NUM_CLASSES + 1)),
        "cls_b": jnp.zeros((NUM_CLASSES + 1,), jnp.float32),
        "box_w": nrm(keys[7], (64, 4 * NUM_CLASSES), scale=0.01),
        "box_b": jnp.zeros((4 * NUM_CLASSES,), jnp.float32),
        "pixel_mean": jnp.asarray(PIXEL_MEAN, jnp.float32),
        "pixel_std": jnp.asarray(PIXEL_STD, jnp.float32),
    }


def derive_kernel_params(p):
    """Fold normalization, im2col the backbone conv, fuse+pad heads, cast to bf16."""
    mean = p["pixel_mean"].reshape(IMG_C)
    std = p["pixel_std"].reshape(IMG_C)

    # Backbone: fold (x - mean) / std into the conv weights/bias.  The raw image
    # is padded with the per-channel mean, so the fold is exact at borders.
    w = p["bb_w"]                                               # (3,3,C,O)
    w_fold = w / std[None, None, :, None]
    b_fold = p["bb_b"] - jnp.einsum("ijco,c->o", w, mean / std)
    bb_w = w_fold.reshape(IM2COL_C, FEAT_C)                     # im2col (di,dj,c) order

    # RPN: per-tap conv weights + fused lane-dense (obj | deltas) head, padded to 128.
    rpn_conv_w = p["rpn_conv_w"].reshape(9, FEAT_C, FEAT_C)
    rpn_head_w = jnp.zeros((FEAT_C, RPN_PAD), jnp.float32)
    rpn_head_w = rpn_head_w.at[:, :NUM_ANCHORS].set(p["rpn_obj_w"])
    rpn_head_w = rpn_head_w.at[:, NUM_ANCHORS:NUM_ANCHORS + 4 * NUM_ANCHORS].set(
        p["rpn_del_w"])
    rpn_head_b = jnp.zeros((RPN_PAD,), jnp.float32)
    rpn_head_b = rpn_head_b.at[:NUM_ANCHORS].set(p["rpn_obj_b"])
    rpn_head_b = rpn_head_b.at[NUM_ANCHORS:NUM_ANCHORS + 4 * NUM_ANCHORS].set(
        p["rpn_del_b"])

    # ROI box head: fc1 -> fc2 -> (cls | box), zero-padded to 128-wide MXU tiles.
    din = POOLED * POOLED * FEAT_C
    hid = p["fc1_w"].shape[1]
    nc1 = NUM_CLASSES + 1
    fc1_w = jnp.zeros((din, HID_PAD), jnp.float32).at[:, :hid].set(p["fc1_w"])
    fc1_b = jnp.zeros((HID_PAD,), jnp.float32).at[:hid].set(p["fc1_b"])
    fc2_w = jnp.zeros((HID_PAD, HID_PAD), jnp.float32).at[:hid, :hid].set(p["fc2_w"])
    fc2_b = jnp.zeros((HID_PAD,), jnp.float32).at[:hid].set(p["fc2_b"])
    pred_w = jnp.zeros((HID_PAD, ROI_PAD), jnp.float32)
    pred_w = pred_w.at[:hid, :nc1].set(p["cls_w"])
    pred_w = pred_w.at[:hid, nc1:nc1 + 4 * NUM_CLASSES].set(p["box_w"])
    pred_b = jnp.zeros((ROI_PAD,), jnp.float32)
    pred_b = pred_b.at[:nc1].set(p["cls_b"])
    pred_b = pred_b.at[nc1:nc1 + 4 * NUM_CLASSES].set(p["box_b"])

    bf = lambda a: a.astype(jnp.bfloat16)
    return {
        "bb_w": bf(bb_w), "bb_b": b_fold.reshape(1, FEAT_C),
        "rpn_conv_w": bf(rpn_conv_w),
        "rpn_conv_b": p["rpn_conv_b"].reshape(1, FEAT_C),
        "rpn_head_w": bf(rpn_head_w), "rpn_head_b": rpn_head_b.reshape(1, RPN_PAD),
        "fc1_w": bf(fc1_w), "fc1_b": fc1_b.reshape(1, HID_PAD),
        "fc2_w": bf(fc2_w), "fc2_b": fc2_b.reshape(1, HID_PAD),
        "pred_w": bf(pred_w), "pred_b": pred_b.reshape(1, ROI_PAD),
    }


# ----------------------------- GeneralizedRCNN -----------------------------
class GeneralizedRCNNPallas:
    """Inference path of GeneralizedRCNN with fused Pallas hot-path kernels."""

    def __init__(self, params):
        self.params = params
        self.kparams = derive_kernel_params(params)
        self._core = jax.jit(self._inference_core)

    # preprocess_image: normalization folded into weights; pad with mean + im2col
    # (3x3/s2 taps concatenated -> 27 contraction lanes, one matmul in the kernel).
    def preprocess_image(self, imgs_nchw):
        imgs = jnp.transpose(imgs_nchw, (0, 2, 3, 1)).astype(jnp.float32)
        n, h, w, c = imgs.shape
        mean = self.params["pixel_mean"].reshape(1, 1, 1, c)
        xp = jnp.broadcast_to(mean, (n, h + 2, w + 2, c))
        xp = xp.at[:, 1:h + 1, 1:w + 1, :].set(imgs)
        cols = []
        for di in range(3):
            for dj in range(3):
                cols.append(xp[:, di:di + FEAT_STRIDE * FEAT_H:FEAT_STRIDE,
                               dj:dj + FEAT_STRIDE * FEAT_W:FEAT_STRIDE, :])
        x_cols = jnp.concatenate(cols, axis=-1)                      # (N,8,8,27)
        x_cols = x_cols.reshape(n * HWPOS, IM2COL_C).astype(jnp.bfloat16)
        return x_cols, [(h, w)] * n

    def proposal_generator(self, rpn_out, n):
        obj = rpn_out[:, :NUM_ANCHORS].reshape(n, HWPOS * NUM_ANCHORS)
        deltas = rpn_out[:, NUM_ANCHORS:NUM_ANCHORS + 4 * NUM_ANCHORS]
        deltas = deltas.reshape(n, HWPOS * NUM_ANCHORS, 4)
        anchors = make_anchors(FEAT_H, FEAT_W, FEAT_STRIDE, ANCHOR_SIZES)
        boxes = apply_deltas(anchors[None, :, :], deltas)
        boxes = clip_boxes(boxes, float(IMG_H), float(IMG_W))
        # TODO(synk): NMS is omitted; top-k objectness selection only.
        scores, idx = jax.lax.top_k(obj, TOPK_PROPOSALS)
        proposals = jnp.take_along_axis(boxes, idx[:, :, None], axis=1)
        return proposals, jax.nn.sigmoid(scores)

    def roi_heads(self, feat_flat, proposals):
        n, k = proposals.shape[0], proposals.shape[1]
        # ROI pooling sample indices (nearest-neighbor bin centers).
        # TODO(synk): exact ROIAlign uses bilinear interpolation, multi-sample bins.
        x1, y1, x2, y2 = (proposals[..., 0], proposals[..., 1],
                          proposals[..., 2], proposals[..., 3])
        bw = jnp.maximum(x2 - x1, 1e-3)
        bh = jnp.maximum(y2 - y1, 1e-3)
        fr = (jnp.arange(POOLED, dtype=jnp.float32) + 0.5) / POOLED
        sx = (x1[..., None] + fr * bw[..., None]) / FEAT_STRIDE - 0.5
        sy = (y1[..., None] + fr * bh[..., None]) / FEAT_STRIDE - 0.5
        ix = jnp.clip(jnp.round(sx).astype(jnp.int32), 0, FEAT_W - 1)   # (N,K,P)
        iy = jnp.clip(jnp.round(sy).astype(jnp.int32), 0, FEAT_H - 1)
        img = jnp.arange(n, dtype=jnp.int32)[:, None, None, None]
        flat = (img * HWPOS + iy[:, :, :, None] * FEAT_W + ix[:, :, None, :])
        flat = flat.reshape(n * k, POOLED * POOLED)                     # (M, 4)
        sel = jax.nn.one_hot(flat, feat_flat.shape[0], dtype=jnp.bfloat16)
        sel = jnp.transpose(sel, (1, 0, 2))                             # (4, M, total)

        out = roi_pool_head_fused(sel, feat_flat, self.kparams)         # (M, 128) f32
        nc1 = NUM_CLASSES + 1
        cls_logits = out[:, :nc1]
        box_deltas = out[:, nc1:nc1 + 4 * NUM_CLASSES].reshape(n * k, NUM_CLASSES, 4)

        probs = jax.nn.softmax(cls_logits, axis=-1)                      # bg = last idx
        fg_probs = probs[:, :NUM_CLASSES]
        pred_classes = jnp.argmax(fg_probs, axis=-1)
        scores = jnp.max(fg_probs, axis=-1)

        sel_deltas = jnp.take_along_axis(
            box_deltas, pred_classes[:, None, None], axis=1)[:, 0, :]
        pred_boxes = apply_deltas(proposals.reshape(n * k, 4), sel_deltas,
                                  weights=ROI_BOX_WEIGHTS)
        pred_boxes = clip_boxes(pred_boxes, float(IMG_H), float(IMG_W))
        return (pred_boxes.reshape(n, k, 4),
                scores.reshape(n, k),
                pred_classes.reshape(n, k))

    def _inference_core(self, imgs_nchw):
        n = imgs_nchw.shape[0]
        x_cols, _ = self.preprocess_image(imgs_nchw)
        feat_flat, rpn_out = backbone_rpn_fused(x_cols, self.kparams)
        proposals, _ = self.proposal_generator(rpn_out, n)
        return self.roi_heads(feat_flat, proposals)

    @staticmethod
    def _postprocess(results, batched_inputs, image_sizes):
        processed = []
        for r, inp, (ih, iw) in zip(results, batched_inputs, image_sizes):
            oh = float(inp.get("height", ih))
            ow = float(inp.get("width", iw))
            sx, sy = ow / iw, oh / ih
            b = r["pred_boxes"]
            b = jnp.stack([b[:, 0] * sx, b[:, 1] * sy,
                           b[:, 2] * sx, b[:, 3] * sy], axis=-1)
            b = clip_boxes(b, oh, ow)
            processed.append({"instances": {
                "pred_boxes": b,
                "scores": r["scores"],
                "pred_classes": r["pred_classes"],
            }})
        return processed

    def inference(self, batched_inputs, do_postprocess=True):
        imgs_nchw = jnp.stack([x["image"] for x in batched_inputs], axis=0)
        pred_boxes, scores, pred_classes = self._core(imgs_nchw)
        n = pred_boxes.shape[0]
        image_sizes = [(IMG_H, IMG_W)] * n
        results = [{"pred_boxes": pred_boxes[i],
                    "scores": scores[i],
                    "pred_classes": pred_classes[i]} for i in range(n)]
        if do_postprocess:
            return GeneralizedRCNN_postprocess(results, batched_inputs, image_sizes)
        return results

    # TODO(synk): training forward (RPN/ROI losses) not implemented; eval-path only.
    def __call__(self, batched_inputs):
        return self.inference(batched_inputs)


def GeneralizedRCNN_postprocess(results, batched_inputs, image_sizes):
    return GeneralizedRCNNPallas._postprocess(results, batched_inputs, image_sizes)


# ----------------------------- main -----------------------------
if __name__ == "__main__":
    key = jax.random.PRNGKey(0)
    imgs = jax.random.uniform(key, (2, IMG_C, IMG_H, IMG_W),
                              dtype=jnp.float32) * 255.0
    batched_inputs = [
        {"image": imgs[i], "height": IMG_H, "width": IMG_W} for i in range(2)
    ]

    model = GeneralizedRCNNPallas(init_params())
    outputs = model(batched_inputs)
    jax.block_until_ready(outputs)

    assert len(outputs) == 2
    assert outputs[0]["instances"]["pred_boxes"].shape == (TOPK_PROPOSALS, 4)
    assert outputs[0]["instances"]["scores"].shape == (TOPK_PROPOSALS,)
    assert outputs[0]["instances"]["pred_classes"].shape == (TOPK_PROPOSALS,)
    print("KERNEL_OK")
</pallas_src>

<mosaic_0001>
module attributes {stable_mosaic.version = 11 : i64} {
  func.func @_backbone_rpn_fused_kernel(%arg0: i32, %arg1: memref<128x27xbf16, #tpu.memory_space<vmem>>, %arg2: memref<27x32xbf16, #tpu.memory_space<vmem>>, %arg3: memref<1x32xf32, #tpu.memory_space<vmem>>, %arg4: memref<9x32x32xbf16, #tpu.memory_space<vmem>>, %arg5: memref<1x32xf32, #tpu.memory_space<vmem>>, %arg6: memref<32x128xbf16, #tpu.memory_space<vmem>>, %arg7: memref<1x128xf32, #tpu.memory_space<vmem>>, %arg8: memref<128x32xbf16, #tpu.memory_space<vmem>>, %arg9: memref<128x128xf32, #tpu.memory_space<vmem>>) attributes {dimension_semantics = [#tpu.dimension_semantics<arbitrary>], iteration_bounds = array<i64: 1>, scalar_prefetch = 0 : i64, scratch_operands = 0 : i64, tpu.core_type = #tpu.core_type<tc>, window_params = [{pipeline_mode = #tpu.pipeline_mode<synchronous>, transform_indices = @transform_0, window_bounds = array<i64: 128, 27>}, {pipeline_mode = #tpu.pipeline_mode<synchronous>, transform_indices = @transform_1, window_bounds = array<i64: 27, 32>}, {pipeline_mode = #tpu.pipeline_mode<synchronous>, transform_indices = @transform_2, window_bounds = array<i64: 1, 32>}, {pipeline_mode = #tpu.pipeline_mode<synchronous>, transform_indices = @transform_3, window_bounds = array<i64: 9, 32, 32>}, {pipeline_mode = #tpu.pipeline_mode<synchronous>, transform_indices = @transform_4, window_bounds = array<i64: 1, 32>}, {pipeline_mode = #tpu.pipeline_mode<synchronous>, transform_indices = @transform_5, window_bounds = array<i64: 32, 128>}, {pipeline_mode = #tpu.pipeline_mode<synchronous>, transform_indices = @transform_6, window_bounds = array<i64: 1, 128>}, {pipeline_mode = #tpu.pipeline_mode<synchronous>, transform_indices = @transform_7, window_bounds = array<i64: 128, 32>}, {pipeline_mode = #tpu.pipeline_mode<synchronous>, transform_indices = @transform_8, window_bounds = array<i64: 128, 128>}]} {
    %c0 = arith.constant 0 : index
    %c0_0 = arith.constant 0 : index
    %0 = vector.load %arg1[%c0, %c0_0] : memref<128x27xbf16, #tpu.memory_space<vmem>>, vector<128x27xbf16>
    %c0_1 = arith.constant 0 : index
    %c0_2 = arith.constant 0 : index
    %1 = vector.load %arg2[%c0_1, %c0_2] : memref<27x32xbf16, #tpu.memory_space<vmem>>, vector<27x32xbf16>
    %cst = arith.constant dense<0.000000e+00> : vector<128x32xf32>
    %2 = tpu.matmul %0, %1, %cst {dimension_numbers = #tpu.dot_dimension_numbers<[1], [0], [0], [1], [0, 0, 1, 1], [], []>} : vector<128x27xbf16>, vector<27x32xbf16>, vector<128x32xf32> -> vector<128x32xf32>
    %c0_3 = arith.constant 0 : index
    %c0_4 = arith.constant 0 : index
    %3 = vector.load %arg3[%c0_3, %c0_4] : memref<1x32xf32, #tpu.memory_space<vmem>>, vector<1x32xf32>
    %4 = vector.broadcast %3 : vector<1x32xf32> to vector<128x32xf32>
    %5 = arith.addf %2, %4 : vector<128x32xf32>
    %cst_5 = arith.constant 0.000000e+00 : f32
    %6 = vector.broadcast %cst_5 : f32 to vector<128x32xf32>
    %7 = arith.maximumf %5, %6 : vector<128x32xf32>
    %8 = arith.truncf %7 : vector<128x32xf32> to vector<128x32xbf16>
    %c0_6 = arith.constant 0 : index
    %c0_7 = arith.constant 0 : index
    %9 = vector.load %arg8[%c0_6, %c0_7] : memref<128x32xbf16, #tpu.memory_space<vmem>>, vector<128x32xbf16>
    tpu.vector_store %arg8[%c0_6, %c0_7], %8 {strides = array<i32>} : memref<128x32xbf16, #tpu.memory_space<vmem>>, vector<128x32xbf16>,
    %10 = tpu.iota {dimensions = array<i32: 0>} : vector<128x1xi32>
    %c7_i32 = arith.constant 7 : i32
    %11 = vector.broadcast %c7_i32 : i32 to vector<128x1xi32>
    %12 = arith.andi %10, %11 : vector<128x1xi32>
    %c3_i32 = arith.constant 3 : i32
    %13 = vector.broadcast %c3_i32 : i32 to vector<128x1xi32>
    %14 = arith.shrsi %10, %13 : vector<128x1xi32>
    %c7_i32_8 = arith.constant 7 : i32
    %15 = vector.broadcast %c7_i32_8 : i32 to vector<128x1xi32>
    %16 = arith.andi %14, %15 : vector<128x1xi32>
    %cst_9 = arith.constant 0.000000e+00 : f32
    %17 = vector.broadcast %cst_9 : f32 to vector<128x32xf32>
    %c9_i32 = arith.constant 9 : i32
    %18 = tpu.dynamic_rotate %7 by %c9_i32 dim 0 : vector<128x32xf32>, i32 -> vector<128x32xf32>
    %c1_i32 = arith.constant 1 : i32
    %19 = vector.broadcast %c1_i32 : i32 to vector<128x1xi32>
    %20 = arith.cmpi sge, %16, %19 : vector<128x1xi32>
    %c1_i32_10 = arith.constant 1 : i32
    %21 = vector.broadcast %c1_i32_10 : i32 to vector<128x1xi32>
    %22 = arith.cmpi sge, %12, %21 : vector<128x1xi32>
    %23 = arith.andi %20, %22 : vector<128x1xi1>
    %cst_11 = arith.constant 0.000000e+00 : f32
    %24 = vector.shape_cast %23 : vector<128x1xi1> to vector<128x1xi1>
    %25 = vector.broadcast %24 : vector<128x1xi1> to vector<128x32xi1>
    %26 = vector.broadcast %cst_11 : f32 to vector<128x32xf32>
    %27 = arith.select %25, %18, %26 : vector<128x32xi1>, vector<128x32xf32>
    %28 = arith.truncf %27 : vector<128x32xf32> to vector<128x32xbf16>
    %c0_12 = arith.constant 0 : index
    %c0_13 = arith.constant 0 : index
    %c0_14 = arith.constant 0 : index
    %29 = vector.load %arg4[%c0_12, %c0_13, %c0_14] : memref<9x32x32xbf16, #tpu.memory_space<vmem>>, vector<1x32x32xbf16>
    %30 = vector.shape_cast %29 : vector<1x32x32xbf16> to vector<32x32xbf16>
    %cst_15 = arith.constant dense<0.000000e+00> : vector<128x32xf32>
    %31 = tpu.matmul %28, %30, %cst_15 {dimension_numbers = #tpu.dot_dimension_numbers<[1], [0], [0], [1], [0, 0, 1, 1], [], []>} : vector<128x32xbf16>, vector<32x32xbf16>, vector<128x32xf32> -> vector<128x32xf32>
    %32 = arith.addf %17, %31 : vector<128x32xf32>
    %c8_i32 = arith.constant 8 : i32
    %33 = tpu.dynamic_rotate %7 by %c8_i32 dim 0 : vector<128x32xf32>, i32 -> vector<128x32xf32>
    %c1_i32_16 = arith.constant 1 : i32
    %34 = vector.broadcast %c1_i32_16 : i32 to vector<128x1xi32>
    %35 = arith.cmpi sge, %16, %34 : vector<128x1xi32>
    %cst_17 = arith.constant 0.000000e+00 : f32
    %36 = vector.shape_cast %35 : vector<128x1xi1> to vector<128x1xi1>
    %37 = vector.broadcast %36 : vector<128x1xi1> to vector<128x32xi1>
    %38 = vector.broadcast %cst_17 : f32 to vector<128x32xf32>
    %39 = arith.select %37, %33, %38 : vector<128x32xi1>, vector<128x32xf32>
    %40 = arith.truncf %39 : vector<128x32xf32> to vector<128x32xbf16>
    %c1 = arith.constant 1 : index
    %c0_18 = arith.constant 0 : index
    %c0_19 = arith.constant 0 : index
    %41 = vector.load %arg4[%c1, %c0_18, %c0_19] : memref<9x32x32xbf16, #tpu.memory_space<vmem>>, vector<1x32x32xbf16>
    %42 = vector.shape_cast %41 : vector<1x32x32xbf16> to vector<32x32xbf16>
    %cst_20 = arith.constant dense<0.000000e+00> : vector<128x32xf32>
    %43 = tpu.matmul %40, %42, %cst_20 {dimension_numbers = #tpu.dot_dimension_numbers<[1], [0], [0], [1], [0, 0, 1, 1], [], []>} : vector<128x32xbf16>, vector<32x32xbf16>, vector<128x32xf32> -> vector<128x32xf32>
    %44 = arith.addf %32, %43 : vector<128x32xf32>
    %c7_i32_21 = arith.constant 7 : i32
    %45 = tpu.dynamic_rotate %7 by %c7_i32_21 dim 0 : vector<128x32xf32>, i32 -> vector<128x32xf32>
    %c1_i32_22 = arith.constant 1 : i32
    %46 = vector.broadcast %c1_i32_22 : i32 to vector<128x1xi32>
    %47 = arith.cmpi sge, %16, %46 : vector<128x1xi32>
    %c6_i32 = arith.constant 6 : i32
    %48 = vector.broadcast %c6_i32 : i32 to vector<128x1xi32>
    %49 = arith.cmpi sle, %12, %48 : vector<128x1xi32>
    %50 = arith.andi %47, %49 : vector<128x1xi1>
    %cst_23 = arith.constant 0.000000e+00 : f32
    %51 = vector.shape_cast %50 : vector<128x1xi1> to vector<128x1xi1>
    %52 = vector.broadcast %51 : vector<128x1xi1> to vector<128x32xi1>
    %53 = vector.broadcast %cst_23 : f32 to vector<128x32xf32>
    %54 = arith.select %52, %45, %53 : vector<128x32xi1>, vector<128x32xf32>
    %55 = arith.truncf %54 : vector<128x32xf32> to vector<128x32xbf16>
    %c2 = arith.constant 2 : index
    %c0_24 = arith.constant 0 : index
    %c0_25 = arith.constant 0 : index
    %56 = vector.load %arg4[%c2, %c0_24, %c0_25] : memref<9x32x32xbf16, #tpu.memory_space<vmem>>, vector<1x32x32xbf16>
    %57 = vector.shape_cast %56 : vector<1x32x32xbf16> to vector<32x32xbf16>
    %cst_26 = arith.constant dense<0.000000e+00> : vector<128x32xf32>
    %58 = tpu.matmul %55, %57, %cst_26 {dimension_numbers = #tpu.dot_dimension_numbers<[1], [0], [0], [1], [0, 0, 1, 1], [], []>} : vector<128x32xbf16>, vector<32x32xbf16>, vector<128x32xf32> -> vector<128x32xf32>
    %59 = arith.addf %44, %58 : vector<128x32xf32>
    %c1_i32_27 = arith.constant 1 : i32
    %60 = tpu.dynamic_rotate %7 by %c1_i32_27 dim 0 : vector<128x32xf32>, i32 -> vector<128x32xf32>
    %c1_i32_28 = arith.constant 1 : i32
    %61 = vector.broadcast %c1_i32_28 : i32 to vector<128x1xi32>
    %62 = arith.cmpi sge, %12, %61 : vector<128x1xi32>
    %cst_29 = arith.constant 0.000000e+00 : f32
    %63 = vector.shape_cast %62 : vector<128x1xi1> to vector<128x1xi1>
    %64 = vector.broadcast %63 : vector<128x1xi1> to vector<128x32xi1>
    %65 = vector.broadcast %cst_29 : f32 to vector<128x32xf32>
    %66 = arith.select %64, %60, %65 : vector<128x32xi1>, vector<128x32xf32>
    %67 = arith.truncf %66 : vector<128x32xf32> to vector<128x32xbf16>
    %c3 = arith.constant 3 : index
    %c0_30 = arith.constant 0 : index
    %c0_31 = arith.constant 0 : index
    %68 = vector.load %arg4[%c3, %c0_30, %c0_31] : memref<9x32x32xbf16, #tpu.memory_space<vmem>>, vector<1x32x32xbf16>
    %69 = vector.shape_cast %68 : vector<1x32x32xbf16> to vector<32x32xbf16>
    %cst_32 = arith.constant dense<0.000000e+00> : vector<128x32xf32>
    %70 = tpu.matmul %67, %69, %cst_32 {dimension_numbers = #tpu.dot_dimension_numbers<[1], [0], [0], [1], [0, 0, 1, 1], [], []>} : vector<128x32xbf16>, vector<32x32xbf16>, vector<128x32xf32> -> vector<128x32xf32>
    %71 = arith.addf %59, %70 : vector<128x32xf32>
    %72 = arith.truncf %7 : vector<128x32xf32> to vector<128x32xbf16>
    %c4 = arith.constant 4 : index
    %c0_33 = arith.constant 0 : index
    %c0_34 = arith.constant 0 : index
    %73 = vector.load %arg4[%c4, %c0_33, %c0_34] : memref<9x32x32xbf16, #tpu.memory_space<vmem>>, vector<1x32x32xbf16>
    %74 = vector.shape_cast %73 : vector<1x32x32xbf16> to vector<32x32xbf16>
    %cst_35 = arith.constant dense<0.000000e+00> : vector<128x32xf32>
    %75 = tpu.matmul %72, %74, %cst_35 {dimension_numbers = #tpu.dot_dimension_numbers<[1], [0], [0], [1], [0, 0, 1, 1], [], []>} : vector<128x32xbf16>, vector<32x32xbf16>, vector<128x32xf32> -> vector<128x32xf32>
    %76 = arith.addf %71, %75 : vector<128x32xf32>
    %c127_i32 = arith.constant 127 : i32
    %77 = tpu.dynamic_rotate %7 by %c127_i32 dim 0 : vector<128x32xf32>, i32 -> vector<128x32xf32>
    %c6_i32_36 = arith.constant 6 : i32
    %78 = vector.broadcast %c6_i32_36 : i32 to vector<128x1xi32>
    %79 = arith.cmpi sle, %12, %78 : vector<128x1xi32>
    %cst_37 = arith.constant 0.000000e+00 : f32
    %80 = vector.shape_cast %79 : vector<128x1xi1> to vector<128x1xi1>
    %81 = vector.broadcast %80 : vector<128x1xi1> to vector<128x32xi1>
    %82 = vector.broadcast %cst_37 : f32 to vector<128x32xf32>
    %83 = arith.select %81, %77, %82 : vector<128x32xi1>, vector<128x32xf32>
    %84 = arith.truncf %83 : vector<128x32xf32> to vector<128x32xbf16>
    %c5 = arith.constant 5 : index
    %c0_38 = arith.constant 0 : index
    %c0_39 = arith.constant 0 : index
    %85 = vector.load %arg4[%c5, %c0_38, %c0_39] : memref<9x32x32xbf16, #tpu.memory_space<vmem>>, vector<1x32x32xbf16>
    %86 = vector.shape_cast %85 : vector<1x32x32xbf16> to vector<32x32xbf16>
    %cst_40 = arith.constant dense<0.000000e+00> : vector<128x32xf32>
    %87 = tpu.matmul %84, %86, %cst_40 {dimension_numbers = #tpu.dot_dimension_numbers<[1], [0], [0], [1], [0, 0, 1, 1], [], []>} : vector<128x32xbf16>, vector<32x32xbf16>, vector<128x32xf32> -> vector<128x32xf32>
    %88 = arith.addf %76, %87 : vector<128x32xf32>
    %c121_i32 = arith.constant 121 : i32
    %89 = tpu.dynamic_rotate %7 by %c121_i32 dim 0 : vector<128x32xf32>, i32 -> vector<128x32xf32>
    %c6_i32_41 = arith.constant 6 : i32
    %90 = vector.broadcast %c6_i32_41 : i32 to vector<128x1xi32>
    %91 = arith.cmpi sle, %16, %90 : vector<128x1xi32>
    %c1_i32_42 = arith.constant 1 : i32
    %92 = vector.broadcast %c1_i32_42 : i32 to vector<128x1xi32>
    %93 = arith.cmpi sge, %12, %92 : vector<128x1xi32>
    %94 = arith.andi %91, %93 : vector<128x1xi1>
    %cst_43 = arith.constant 0.000000e+00 : f32
    %95 = vector.shape_cast %94 : vector<128x1xi1> to vector<128x1xi1>
    %96 = vector.broadcast %95 : vector<128x1xi1> to vector<128x32xi1>
    %97 = vector.broadcast %cst_43 : f32 to vector<128x32xf32>
    %98 = arith.select %96, %89, %97 : vector<128x32xi1>, vector<128x32xf32>
    %99 = arith.truncf %98 : vector<128x32xf32> to vector<128x32xbf16>
    %c6 = arith.constant 6 : index
    %c0_44 = arith.constant 0 : index
    %c0_45 = arith.constant 0 : index
    %100 = vector.load %arg4[%c6, %c0_44, %c0_45] : memref<9x32x32xbf16, #tpu.memory_space<vmem>>, vector<1x32x32xbf16>
    %101 = vector.shape_cast %100 : vector<1x32x32xbf16> to vector<32x32xbf16>
    %cst_46 = arith.constant dense<0.000000e+00> : vector<128x32xf32>
    %102 = tpu.matmul %99, %101, %cst_46 {dimension_numbers = #tpu.dot_dimension_numbers<[1], [0], [0], [1], [0, 0, 1, 1], [], []>} : vector<128x32xbf16>, vector<32x32xbf16>, vector<128x32xf32> -> vector<128x32xf32>
    %103 = arith.addf %88, %102 : vector<128x32xf32>
    %c120_i32 = arith.constant 120 : i32
    %104 = tpu.dynamic_rotate %7 by %c120_i32 dim 0 : vector<128x32xf32>, i32 -> vector<128x32xf32>
    %c6_i32_47 = arith.constant 6 : i32
    %105 = vector.broadcast %c6_i32_47 : i32 to vector<128x1xi32>
    %106 = arith.cmpi sle, %16, %105 : vector<128x1xi32>
    %cst_48 = arith.constant 0.000000e+00 : f32
    %107 = vector.shape_cast %106 : vector<128x1xi1> to vector<128x1xi1>
    %108 = vector.broadcast %107 : vector<128x1xi1> to vector<128x32xi1>
    %109 = vector.broadcast %cst_48 : f32 to vector<128x32xf32>
    %110 = arith.select %108, %104, %109 : vector<128x32xi1>, vector<128x32xf32>
    %111 = arith.truncf %110 : vector<128x32xf32> to vector<128x32xbf16>
    %c7 = arith.constant 7 : index
    %c0_49 = arith.constant 0 : index
    %c0_50 = arith.constant 0 : index
    %112 = vector.load %arg4[%c7, %c0_49, %c0_50] : memref<9x32x32xbf16, #tpu.memory_space<vmem>>, vector<1x32x32xbf16>
    %113 = vector.shape_cast %112 : vector<1x32x32xbf16> to vector<32x32xbf16>
    %cst_51 = arith.constant dense<0.000000e+00> : vector<128x32xf32>
    %114 = tpu.matmul %111, %113, %cst_51 {dimension_numbers = #tpu.dot_dimension_numbers<[1], [0], [0], [1], [0, 0, 1, 1], [], []>} : vector<128x32xbf16>, vector<32x32xbf16>, vector<128x32xf32> -> vector<128x32xf32>
    %115 = arith.addf %103, %114 : vector<128x32xf32>
    %c119_i32 = arith.constant 119 : i32
    %116 = tpu.dynamic_rotate %7 by %c119_i32 dim 0 : vector<128x32xf32>, i32 -> vector<128x32xf32>
    %c6_i32_52 = arith.constant 6 : i32
    %117 = vector.broadcast %c6_i32_52 : i32 to vector<128x1xi32>
    %118 = arith.cmpi sle, %16, %117 : vector<128x1xi32>
    %c6_i32_53 = arith.constant 6 : i32
    %119 = vector.broadcast %c6_i32_53 : i32 to vector<128x1xi32>
    %120 = arith.cmpi sle, %12, %119 : vector<128x1xi32>
    %121 = arith.andi %118, %120 : vector<128x1xi1>
    %cst_54 = arith.constant 0.000000e+00 : f32
    %122 = vector.shape_cast %121 : vector<128x1xi1> to vector<128x1xi1>
    %123 = vector.broadcast %122 : vector<128x1xi1> to vector<128x32xi1>
    %124 = vector.broadcast %cst_54 : f32 to vector<128x32xf32>
    %125 = arith.select %123, %116, %124 : vector<128x32xi1>, vector<128x32xf32>
    %126 = arith.truncf %125 : vector<128x32xf32> to vector<128x32xbf16>
    %c8 = arith.constant 8 : index
    %c0_55 = arith.constant 0 : index
    %c0_56 = arith.constant 0 : index
    %127 = vector.load %arg4[%c8, %c0_55, %c0_56] : memref<9x32x32xbf16, #tpu.memory_space<vmem>>, vector<1x32x32xbf16>
    %128 = vector.shape_cast %127 : vector<1x32x32xbf16> to vector<32x32xbf16>
    %cst_57 = arith.constant dense<0.000000e+00> : vector<128x32xf32>
    %129 = tpu.matmul %126, %128, %cst_57 {dimension_numbers = #tpu.dot_dimension_numbers<[1], [0], [0], [1], [0, 0, 1, 1], [], []>} : vector<128x32xbf16>, vector<32x32xbf16>, vector<128x32xf32> -> vector<128x32xf32>
    %130 = arith.addf %115, %129 : vector<128x32xf32>
    %c0_58 = arith.constant 0 : index
    %c0_59 = arith.constant 0 : index
    %131 = vector.load %arg5[%c0_58, %c0_59] : memref<1x32xf32, #tpu.memory_space<vmem>>, vector<1x32xf32>
    %132 = vector.broadcast %131 : vector<1x32xf32> to vector<128x32xf32>
    %133 = arith.addf %130, %132 : vector<128x32xf32>
    %cst_60 = arith.constant 0.000000e+00 : f32
    %134 = vector.broadcast %cst_60 : f32 to vector<128x32xf32>
    %135 = arith.maximumf %133, %134 : vector<128x32xf32>
    %136 = arith.truncf %135 : vector<128x32xf32> to vector<128x32xbf16>
    %c0_61 = arith.constant 0 : index
    %c0_62 = arith.constant 0 : index
    %137 = vector.load %arg6[%c0_61, %c0_62] : memref<32x128xbf16, #tpu.memory_space<vmem>>, vector<32x128xbf16>
    %cst_63 = arith.constant dense<0.000000e+00> : vector<128x128xf32>
    %138 = tpu.matmul %136, %137, %cst_63 {dimension_numbers = #tpu.dot_dimension_numbers<[1], [0], [0], [1], [0, 0, 1, 1], [], []>} : vector<128x32xbf16>, vector<32x128xbf16>, vector<128x128xf32> -> vector<128x128xf32>
    %c0_64 = arith.constant 0 : index
    %c0_65 = arith.constant 0 : index
    %139 = vector.load %arg7[%c0_64, %c0_65] : memref<1x128xf32, #tpu.memory_space<vmem>>, vector<1x128xf32>
    %140 = vector.broadcast %139 : vector<1x128xf32> to vector<128x128xf32>
    %141 = arith.addf %138, %140 : vector<128x128xf32>
    %c0_66 = arith.constant 0 : index
    %c0_67 = arith.constant 0 : index
    %142 = vector.load %arg9[%c0_66, %c0_67] : memref<128x128xf32, #tpu.memory_space<vmem>>, vector<128x128xf32>
    tpu.vector_store %arg9[%c0_66, %c0_67], %141 {strides = array<i32>} : memref<128x128xf32, #tpu.memory_space<vmem>>, vector<128x128xf32>,
    return
  }
  func.func @transform_0(%arg0: i32) -> (i32, i32) {
    %c0_i32 = arith.constant 0 : i32
    %c0_i32_0 = arith.constant 0 : i32
    %c0_i32_1 = arith.constant 0 : i32
    return %c0_i32, %c0_i32_0 : i32, i32
  }
  func.func @transform_1(%arg0: i32) -> (i32, i32) {
    %c0_i32 = arith.constant 0 : i32
    %c0_i32_0 = arith.constant 0 : i32
    %c0_i32_1 = arith.constant 0 : i32
    return %c0_i32, %c0_i32_0 : i32, i32
  }
  func.func @transform_2(%arg0: i32) -> (i32, i32) {
    %c0_i32 = arith.constant 0 : i32
    %c0_i32_0 = arith.constant 0 : i32
    %c0_i32_1 = arith.constant 0 : i32
    return %c0_i32, %c0_i32_0 : i32, i32
  }
  func.func @transform_3(%arg0: i32) -> (i32, i32, i32) {
    %c0_i32 = arith.constant 0 : i32
    %c0_i32_0 = arith.constant 0 : i32
    %c0_i32_1 = arith.constant 0 : i32
    %c0_i32_2 = arith.constant 0 : i32
    return %c0_i32, %c0_i32_0, %c0_i32_1 : i32, i32, i32
  }
  func.func @transform_4(%arg0: i32) -> (i32, i32) {
    %c0_i32 = arith.constant 0 : i32
    %c0_i32_0 = arith.constant 0 : i32
    %c0_i32_1 = arith.constant 0 : i32
    return %c0_i32, %c0_i32_0 : i32, i32
  }
  func.func @transform_5(%arg0: i32) -> (i32, i32) {
    %c0_i32 = arith.constant 0 : i32
    %c0_i32_0 = arith.constant 0 : i32
    %c0_i32_1 = arith.constant 0 : i32
    return %c0_i32, %c0_i32_0 : i32, i32
  }
  func.func @transform_6(%arg0: i32) -> (i32, i32) {
    %c0_i32 = arith.constant 0 : i32
    %c0_i32_0 = arith.constant 0 : i32
    %c0_i32_1 = arith.constant 0 : i32
    return %c0_i32, %c0_i32_0 : i32, i32
  }
  func.func @transform_7(%arg0: i32) -> (i32, i32) {
    %c0_i32 = arith.constant 0 : i32
    %c0_i32_0 = arith.constant 0 : i32
    %c0_i32_1 = arith.constant 0 : i32
    return %c0_i32, %c0_i32_0 : i32, i32
  }
  func.func @transform_8(%arg0: i32) -> (i32, i32) {
    %c0_i32 = arith.constant 0 : i32
    %c0_i32_0 = arith.constant 0 : i32
    %c0_i32_1 = arith.constant 0 : i32
    return %c0_i32, %c0_i32_0 : i32, i32
  }
}

module attributes {stable_mosaic.version = 11 : i64} {
  func.func @_roi_pool_head_fused_kernel(%arg0: i32, %arg1: memref<4x16x128xbf16, #tpu.memory_space<vmem>>, %arg2: memref<128x32xbf16, #tpu.memory_space<vmem>>, %arg3: memref<128x128xbf16, #tpu.memory_space<vmem>>, %arg4: memref<1x128xf32, #tpu.memory_space<vmem>>, %arg5: memref<128x128xbf16, #tpu.memory_space<vmem>>, %arg6: memref<1x128xf32, #tpu.memory_space<vmem>>, %arg7: memref<128x128xbf16, #tpu.memory_space<vmem>>, %arg8: memref<1x128xf32, #tpu.memory_space<vmem>>, %arg9: memref<16x128xf32, #tpu.memory_space<vmem>>) attributes {dimension_semantics = [#tpu.dimension_semantics<arbitrary>], iteration_bounds = array<i64: 1>, scalar_prefetch = 0 : i64, scratch_operands = 0 : i64, tpu.core_type = #tpu.core_type<tc>, window_params = [{pipeline_mode = #tpu.pipeline_mode<synchronous>, transform_indices = @transform_0, window_bounds = array<i64: 4, 16, 128>}, {pipeline_mode = #tpu.pipeline_mode<synchronous>, transform_indices = @transform_1, window_bounds = array<i64: 128, 32>}, {pipeline_mode = #tpu.pipeline_mode<synchronous>, transform_indices = @transform_2, window_bounds = array<i64: 128, 128>}, {pipeline_mode = #tpu.pipeline_mode<synchronous>, transform_indices = @transform_3, window_bounds = array<i64: 1, 128>}, {pipeline_mode = #tpu.pipeline_mode<synchronous>, transform_indices = @transform_4, window_bounds = array<i64: 128, 128>}, {pipeline_mode = #tpu.pipeline_mode<synchronous>, transform_indices = @transform_5, window_bounds = array<i64: 1, 128>}, {pipeline_mode = #tpu.pipeline_mode<synchronous>, transform_indices = @transform_6, window_bounds = array<i64: 128, 128>}, {pipeline_mode = #tpu.pipeline_mode<synchronous>, transform_indices = @transform_7, window_bounds = array<i64: 1, 128>}, {pipeline_mode = #tpu.pipeline_mode<synchronous>, transform_indices = @transform_8, window_bounds = array<i64: 16, 128>}]} {
    %c0 = arith.constant 0 : index
    %c0_0 = arith.constant 0 : index
    %0 = vector.load %arg2[%c0, %c0_0] : memref<128x32xbf16, #tpu.memory_space<vmem>>, vector<128x32xbf16>
    %cst = arith.constant 0.000000e+00 : f32
    %1 = vector.broadcast %cst : f32 to vector<16x128xf32>
    %c0_1 = arith.constant 0 : index
    %c0_2 = arith.constant 0 : index
    %c0_3 = arith.constant 0 : index
    %2 = vector.load %arg1[%c0_1, %c0_2, %c0_3] : memref<4x16x128xbf16, #tpu.memory_space<vmem>>, vector<1x16x128xbf16>
    %3 = vector.shape_cast %2 : vector<1x16x128xbf16> to vector<16x128xbf16>
    %cst_4 = arith.constant dense<0.000000e+00> : vector<16x32xf32>
    %4 = tpu.matmul %3, %0, %cst_4 {dimension_numbers = #tpu.dot_dimension_numbers<[1], [0], [0], [1], [0, 0, 1, 1], [], []>} : vector<16x128xbf16>, vector<128x32xbf16>, vector<16x32xf32> -> vector<16x32xf32>
    %5 = arith.truncf %4 : vector<16x32xf32> to vector<16x32xbf16>
    %c0_5 = arith.constant 0 : index
    %c0_6 = arith.constant 0 : index
    %6 = vector.load %arg3[%c0_5, %c0_6] : memref<128x128xbf16, #tpu.memory_space<vmem>>, vector<32x128xbf16>
    %cst_7 = arith.constant dense<0.000000e+00> : vector<16x128xf32>
    %7 = tpu.matmul %5, %6, %cst_7 {dimension_numbers = #tpu.dot_dimension_numbers<[1], [0], [0], [1], [0, 0, 1, 1], [], []>} : vector<16x32xbf16>, vector<32x128xbf16>, vector<16x128xf32> -> vector<16x128xf32>
    %8 = arith.addf %1, %7 : vector<16x128xf32>
    %c1 = arith.constant 1 : index
    %c0_8 = arith.constant 0 : index
    %c0_9 = arith.constant 0 : index
    %9 = vector.load %arg1[%c1, %c0_8, %c0_9] : memref<4x16x128xbf16, #tpu.memory_space<vmem>>, vector<1x16x128xbf16>
    %10 = vector.shape_cast %9 : vector<1x16x128xbf16> to vector<16x128xbf16>
    %cst_10 = arith.constant dense<0.000000e+00> : vector<16x32xf32>
    %11 = tpu.matmul %10, %0, %cst_10 {dimension_numbers = #tpu.dot_dimension_numbers<[1], [0], [0], [1], [0, 0, 1, 1], [], []>} : vector<16x128xbf16>, vector<128x32xbf16>, vector<16x32xf32> -> vector<16x32xf32>
    %12 = arith.truncf %11 : vector<16x32xf32> to vector<16x32xbf16>
    %c32 = arith.constant 32 : index
    %c0_11 = arith.constant 0 : index
    %13 = vector.load %arg3[%c32, %c0_11] : memref<128x128xbf16, #tpu.memory_space<vmem>>, vector<32x128xbf16>
    %cst_12 = arith.constant dense<0.000000e+00> : vector<16x128xf32>
    %14 = tpu.matmul %12, %13, %cst_12 {dimension_numbers = #tpu.dot_dimension_numbers<[1], [0], [0], [1], [0, 0, 1, 1], [], []>} : vector<16x32xbf16>, vector<32x128xbf16>, vector<16x128xf32> -> vector<16x128xf32>
    %15 = arith.addf %8, %14 : vector<16x128xf32>
    %c2 = arith.constant 2 : index
    %c0_13 = arith.constant 0 : index
    %c0_14 = arith.constant 0 : index
    %16 = vector.load %arg1[%c2, %c0_13, %c0_14] : memref<4x16x128xbf16, #tpu.memory_space<vmem>>, vector<1x16x128xbf16>
    %17 = vector.shape_cast %16 : vector<1x16x128xbf16> to vector<16x128xbf16>
    %cst_15 = arith.constant dense<0.000000e+00> : vector<16x32xf32>
    %18 = tpu.matmul %17, %0, %cst_15 {dimension_numbers = #tpu.dot_dimension_numbers<[1], [0], [0], [1], [0, 0, 1, 1], [], []>} : vector<16x128xbf16>, vector<128x32xbf16>, vector<16x32xf32> -> vector<16x32xf32>
    %19 = arith.truncf %18 : vector<16x32xf32> to vector<16x32xbf16>
    %c64 = arith.constant 64 : index
    %c0_16 = arith.constant 0 : index
    %20 = vector.load %arg3[%c64, %c0_16] : memref<128x128xbf16, #tpu.memory_space<vmem>>, vector<32x128xbf16>
    %cst_17 = arith.constant dense<0.000000e+00> : vector<16x128xf32>
    %21 = tpu.matmul %19, %20, %cst_17 {dimension_numbers = #tpu.dot_dimension_numbers<[1], [0], [0], [1], [0, 0, 1, 1], [], []>} : vector<16x32xbf16>, vector<32x128xbf16>, vector<16x128xf32> -> vector<16x128xf32>
    %22 = arith.addf %15, %21 : vector<16x128xf32>
    %c3 = arith.constant 3 : index
    %c0_18 = arith.constant 0 : index
    %c0_19 = arith.constant 0 : index
    %23 = vector.load %arg1[%c3, %c0_18, %c0_19] : memref<4x16x128xbf16, #tpu.memory_space<vmem>>, vector<1x16x128xbf16>
    %24 = vector.shape_cast %23 : vector<1x16x128xbf16> to vector<16x128xbf16>
    %cst_20 = arith.constant dense<0.000000e+00> : vector<16x32xf32>
    %25 = tpu.matmul %24, %0, %cst_20 {dimension_numbers = #tpu.dot_dimension_numbers<[1], [0], [0], [1], [0, 0, 1, 1], [], []>} : vector<16x128xbf16>, vector<128x32xbf16>, vector<16x32xf32> -> vector<16x32xf32>
    %26 = arith.truncf %25 : vector<16x32xf32> to vector<16x32xbf16>
    %c96 = arith.constant 96 : index
    %c0_21 = arith.constant 0 : index
    %27 = vector.load %arg3[%c96, %c0_21] : memref<128x128xbf16, #tpu.memory_space<vmem>>, vector<32x128xbf16>
    %cst_22 = arith.constant dense<0.000000e+00> : vector<16x128xf32>
    %28 = tpu.matmul %26, %27, %cst_22 {dimension_numbers = #tpu.dot_dimension_numbers<[1], [0], [0], [1], [0, 0, 1, 1], [], []>} : vector<16x32xbf16>, vector<32x128xbf16>, vector<16x128xf32> -> vector<16x128xf32>
    %29 = arith.addf %22, %28 : vector<16x128xf32>
    %c0_23 = arith.constant 0 : index
    %c0_24 = arith.constant 0 : index
    %30 = vector.load %arg4[%c0_23, %c0_24] : memref<1x128xf32, #tpu.memory_space<vmem>>, vector<1x128xf32>
    %31 = vector.broadcast %30 : vector<1x128xf32> to vector<16x128xf32>
    %32 = arith.addf %29, %31 : vector<16x128xf32>
    %cst_25 = arith.constant 0.000000e+00 : f32
    %33 = vector.broadcast %cst_25 : f32 to vector<16x128xf32>
    %34 = arith.maximumf %32, %33 : vector<16x128xf32>
    %35 = arith.truncf %34 : vector<16x128xf32> to vector<16x128xbf16>
    %c0_26 = arith.constant 0 : index
    %c0_27 = arith.constant 0 : index
    %36 = vector.load %arg5[%c0_26, %c0_27] : memref<128x128xbf16, #tpu.memory_space<vmem>>, vector<128x128xbf16>
    %cst_28 = arith.constant dense<0.000000e+00> : vector<16x128xf32>
    %37 = tpu.matmul %35, %36, %cst_28 {dimension_numbers = #tpu.dot_dimension_numbers<[1], [0], [0], [1], [0, 0, 1, 1], [], []>} : vector<16x128xbf16>, vector<128x128xbf16>, vector<16x128xf32> -> vector<16x128xf32>
    %c0_29 = arith.constant 0 : index
    %c0_30 = arith.constant 0 : index
    %38 = vector.load %arg6[%c0_29, %c0_30] : memref<1x128xf32, #tpu.memory_space<vmem>>, vector<1x128xf32>
    %39 = vector.broadcast %38 : vector<1x128xf32> to vector<16x128xf32>
    %40 = arith.addf %37, %39 : vector<16x128xf32>
    %cst_31 = arith.constant 0.000000e+00 : f32
    %41 = vector.broadcast %cst_31 : f32 to vector<16x128xf32>
    %42 = arith.maximumf %40, %41 : vector<16x128xf32>
    %43 = arith.truncf %42 : vector<16x128xf32> to vector<16x128xbf16>
    %c0_32 = arith.constant 0 : index
    %c0_33 = arith.constant 0 : index
    %44 = vector.load %arg7[%c0_32, %c0_33] : memref<128x128xbf16, #tpu.memory_space<vmem>>, vector<128x128xbf16>
    %cst_34 = arith.constant dense<0.000000e+00> : vector<16x128xf32>
    %45 = tpu.matmul %43, %44, %cst_34 {dimension_numbers = #tpu.dot_dimension_numbers<[1], [0], [0], [1], [0, 0, 1, 1], [], []>} : vector<16x128xbf16>, vector<128x128xbf16>, vector<16x128xf32> -> vector<16x128xf32>
    %c0_35 = arith.constant 0 : index
    %c0_36 = arith.constant 0 : index
    %46 = vector.load %arg8[%c0_35, %c0_36] : memref<1x128xf32, #tpu.memory_space<vmem>>, vector<1x128xf32>
    %47 = vector.broadcast %46 : vector<1x128xf32> to vector<16x128xf32>
    %48 = arith.addf %45, %47 : vector<16x128xf32>
    %c0_37 = arith.constant 0 : index
    %c0_38 = arith.constant 0 : index
    %49 = vector.load %arg9[%c0_37, %c0_38] : memref<16x128xf32, #tpu.memory_space<vmem>>, vector<16x128xf32>
    tpu.vector_store %arg9[%c0_37, %c0_38], %48 {strides = array<i32>} : memref<16x128xf32, #tpu.memory_space<vmem>>, vector<16x128xf32>,
    return
  }
  func.func @transform_0(%arg0: i32) -> (i32, i32, i32) {
    %c0_i32 = arith.constant 0 : i32
    %c0_i32_0 = arith.constant 0 : i32
    %c0_i32_1 = arith.constant 0 : i32
    %c0_i32_2 = arith.constant 0 : i32
    return %c0_i32, %c0_i32_0, %c0_i32_1 : i32, i32, i32
  }
  func.func @transform_1(%arg0: i32) -> (i32, i32) {
    %c0_i32 = arith.constant 0 : i32
    %c0_i32_0 = arith.constant 0 : i32
    %c0_i32_1 = arith.constant 0 : i32
    return %c0_i32, %c0_i32_0 : i32, i32
  }
  func.func @transform_2(%arg0: i32) -> (i32, i32) {
    %c0_i32 = arith.constant 0 : i32
    %c0_i32_0 = arith.constant 0 : i32
    %c0_i32_1 = arith.constant 0 : i32
    return %c0_i32, %c0_i32_0 : i32, i32
  }
  func.func @transform_3(%arg0: i32) -> (i32, i32) {
    %c0_i32 = arith.constant 0 : i32
    %c0_i32_0 = arith.constant 0 : i32
    %c0_i32_1 = arith.constant 0 : i32
    return %c0_i32, %c0_i32_0 : i32, i32
  }
  func.func @transform_4(%arg0: i32) -> (i32, i32) {
    %c0_i32 = arith.constant 0 : i32
    %c0_i32_0 = arith.constant 0 : i32
    %c0_i32_1 = arith.constant 0 : i32
    return %c0_i32, %c0_i32_0 : i32, i32
  }
  func.func @transform_5(%arg0: i32) -> (i32, i32) {
    %c0_i32 = arith.constant 0 : i32
    %c0_i32_0 = arith.constant 0 : i32
    %c0_i32_1 = arith.constant 0 : i32
    return %c0_i32, %c0_i32_0 : i32, i32
  }
  func.func @transform_6(%arg0: i32) -> (i32, i32) {
    %c0_i32 = arith.constant 0 : i32
    %c0_i32_0 = arith.constant 0 : i32
    %c0_i32_1 = arith.constant 0 : i32
    return %c0_i32, %c0_i32_0 : i32, i32
  }
  func.func @transform_7(%arg0: i32) -> (i32, i32) {
    %c0_i32 = arith.constant 0 : i32
    %c0_i32_0 = arith.constant 0 : i32
    %c0_i32_1 = arith.constant 0 : i32
    return %c0_i32, %c0_i32_0 : i32, i32
  }
  func.func @transform_8(%arg0: i32) -> (i32, i32) {
    %c0_i32 = arith.constant 0 : i32
    %c0_i32_0 = arith.constant 0 : i32
    %c0_i32_1 = arith.constant 0 : i32
    return %c0_i32, %c0_i32_0 : i32, i32
  }
}

</mosaic_0001>

<llo_original>
// kernel: _inference_core.2
$region0: #{_inference_core.2}
  #allocation0 [shape = 'u32[]', space=smem, size = 0x4, offset = 0x4, fixed_abs, tag = 'smem constant byte address 0x4 - core index']
  #allocation1 [shape = 'u32[72,128]{1,0:T(1,128)}', space=vmem, size = 0x9000, scoped, tag = 'internal scratch']
  %s0 = inlined_call_operand.vmem [shape: bf16[128,27], index: 0, kind: input, shape index: {}]
  %s1 = inlined_call_operand.vmem [shape: bf16[27,32], index: 1, kind: input, shape index: {}]
  %s2 = inlined_call_operand.vmem [shape: f32[1,32], index: 2, kind: input, shape index: {}]
  %s3 = inlined_call_operand.vmem [shape: bf16[9,32,32], index: 3, kind: input, shape index: {}]
  %s4 = inlined_call_operand.vmem [shape: f32[1,32], index: 4, kind: input, shape index: {}]
  %s5 = inlined_call_operand.vmem [shape: bf16[32,128], index: 5, kind: input, shape index: {}]
  %s6 = inlined_call_operand.vmem [shape: f32[1,128], index: 6, kind: input, shape index: {}]
  %s7 = inlined_call_operand.vmem [shape: bf16[128,32], index: 7, kind: output, shape index: {0}]
  %s8 = inlined_call_operand.vmem [shape: f32[128,128], index: 8, kind: output, shape index: {1}]
  %9 = xla_tuple %s7, %s8
  %s10 = sld [smem:[#allocation0]]
  $region46: #{_inference_core.2} parent=0
    _
  %s12 = ssub.s32 1, %s10
  %s13 = scalar_select 0, %s12, %s10
  // Predicated region
  $region2: #{_inference_core.2} parent=0 // pred_check
    _
  $region3: #{_inference_core.2} parent=0 // pred_check_branch
    %15 = sbr.rel (0) target = $region5
  $region4: #{_inference_core.2} parent=0 // pred_region
    _
  $region5: #{_inference_core.2} parent=0 // pred_fallthru
    _
  // Predicated region
  $region6: #{_inference_core.2} parent=0 // pred_check
    _
  $region7: #{_inference_core.2} parent=0 // pred_check_branch
    %17 = sbr.rel (0) target = $region9
  $region8: #{_inference_core.2} parent=0 // pred_region
    _
  $region9: #{_inference_core.2} parent=0 // pred_fallthru
    _
  // Predicated region
  $region10: #{_inference_core.2} parent=0 // pred_check
    _
  $region11: #{_inference_core.2} parent=0 // pred_check_branch
    %19 = sbr.rel (0) target = $region13
  $region12: #{_inference_core.2} parent=0 // pred_region
    _
  $region13: #{_inference_core.2} parent=0 // pred_fallthru
    _
  // Predicated region
  $region14: #{_inference_core.2} parent=0 // pred_check
    _
  $region15: #{_inference_core.2} parent=0 // pred_check_branch
    %21 = sbr.rel (0) target = $region17
  $region16: #{_inference_core.2} parent=0 // pred_region
    _
  $region17: #{_inference_core.2} parent=0 // pred_fallthru
    _
  // Predicated region
  $region18: #{_inference_core.2} parent=0 // pred_check
    _
  $region19: #{_inference_core.2} parent=0 // pred_check_branch
    %23 = sbr.rel (0) target = $region21
  $region20: #{_inference_core.2} parent=0 // pred_region
    _
  $region21: #{_inference_core.2} parent=0 // pred_fallthru
    _
  // Predicated region
  $region22: #{_inference_core.2} parent=0 // pred_check
    _
  $region23: #{_inference_core.2} parent=0 // pred_check_branch
    %25 = sbr.rel (0) target = $region25
  $region24: #{_inference_core.2} parent=0 // pred_region
    _
  $region25: #{_inference_core.2} parent=0 // pred_fallthru
    _
  // Predicated region
  $region26: #{_inference_core.2} parent=0 // pred_check
    _
  $region27: #{_inference_core.2} parent=0 // pred_check_branch
    %27 = sbr.rel (0) target = $region29
  $region28: #{_inference_core.2} parent=0 // pred_region
    _
  $region29: #{_inference_core.2} parent=0 // pred_fallthru
    _
  %v29 = vld [vmem:[%s0] sm:$0xf]
  %v30 = vld [vmem:[%s0 + $0x4] sm:$0xf]
  %v31 = vld [vmem:[%s0 + $0x8] sm:$0xf]
  %v32 = vld [vmem:[%s0 + $0xc] sm:$0xf]
  %v33 = vld [vmem:[%s0 + $0x10] sm:$0xf]
  %v34 = vld [vmem:[%s0 + $0x14] sm:$0xf]
  %v35 = vld [vmem:[%s0 + $0x18] sm:$0xf]
  %v36 = vld [vmem:[%s0 + $0x1c] sm:$0xf]
  %v37 = vld [vmem:[%s0 + $0x20] sm:$0xf]
  %v38 = vld [vmem:[%s0 + $0x24] sm:$0xf]
  %v39 = vld [vmem:[%s0 + $0x28] sm:$0xf]
  %v40 = vld [vmem:[%s0 + $0x2c] sm:$0xf]
  %v41 = vld [vmem:[%s0 + $0x30] sm:$0xf]
  %v42 = vld [vmem:[%s0 + $0x34] sm:$0xf]
  %v43 = vld [vmem:[%s0 + $0x38] sm:$0xf]
  %v44 = vld [vmem:[%s0 + $0x3c] sm:$0xf]
  %v45 = vld [vmem:[%s1] sm:$0xf]
  %v46 = vld [vmem:[%s1 + $0x4] sm:$0xf]
  %v47 = vld [vmem:[%s1 + $0x8] sm:$0xf]
  %v48 = vld [vmem:[%s1 + $0xc] sm:$0x3]
  %v49 = vld [vmem:[%s2] sm:$0x1]
  %v51 = vperm.slane %v49, 0
  %v69 = vunpack.c.l.b16 %v29
  %v70 = vunpack.c.l.b16 %v30
  %v71 = vunpack.c.l.b16 %v31
  %v72 = vunpack.c.l.b16 %v32
  %v73 = vunpack.c.l.b16 %v33
  %v74 = vunpack.c.l.b16 %v34
  %v75 = vunpack.c.l.b16 %v35
  %v76 = vunpack.c.l.b16 %v36
  %v77 = vunpack.c.l.b16 %v37
  %v78 = vunpack.c.l.b16 %v38
  %v79 = vunpack.c.l.b16 %v39
  %v80 = vunpack.c.l.b16 %v40
  %v81 = vunpack.c.l.b16 %v41
  %v82 = vunpack.c.l.b16 %v42
  %v83 = vunpack.c.l.b16 %v43
  %v84 = vunpack.c.l.b16 %v44
  %v85 = vpack.c.b16 %v70, %v69
  %v86 = vpack.c.b16 %v72, %v71
  %v87 = vpack.c.b16 %v74, %v73
  %v88 = vpack.c.b16 %v76, %v75
  %v89 = vpack.c.b16 %v78, %v77
  %v90 = vpack.c.b16 %v80, %v79
  %v91 = vpack.c.b16 %v82, %v81
  %v92 = vpack.c.b16 %v84, %v83
  %v97 = vunpack.c.l.b16 %v45
  %v98 = vunpack.c.l.b16 %v46
  %v99 = vunpack.c.l.b16 %v47
  %v100 = vunpack.c.l.b16 %v48
  %v101 = vpack.c.b16 %v98, %v97
  %v102 = vpack.c.b16 %v100, %v99
  %vm104 = vcmask 220160
  %v106 = vsel %vm104, %v85, 0
  %v109 = vsel %vm104, %v86, 0
  %v112 = vsel %vm104, %v87, 0
  %v115 = vsel %vm104, %v88, 0
  %v118 = vsel %vm104, %v89, 0
  %v121 = vsel %vm104, %v90, 0
  %v124 = vsel %vm104, %v91, 0
  %v127 = vsel %vm104, %v92, 0
  %vm129 = vcmask 1044480
  %vm130 = vcmask 1045504
  %v131 = vsel %vm129, 4294967295, 65535
  %v132 = vsel %vm130, %v131, 0
  %v134 = vand.u32 %v102, %v132
  %136 = vmatpush.bf16.msra.mxu0 0
  %137 = vmatpush.bf16.msra.mxu0 0
  %138 = vmatpush.bf16.msra.mxu0 0
  %139 = vmatpush.bf16.msra.mxu0 0
  %140 = vmatpush.bf16.msra.mxu0 0
  %141 = vmatpush.bf16.msra.mxu0 0
  %142 = vmatpush.bf16.msra.mxu0 %v134
  %143 = vmatpush.bf16.msra.mxu0 %v101
  %144 = vmatmul.bf16.gmra.mxu0 %v106
  %v145 = vpop.f32.mrf.mxu0
  %v146 = vadd.f32 %v51, %v145
  %v147 = vpop.f32.mrf.mxu0
  %v148 = vadd.f32 %v51, %v147
  %149 = vmatmul.bf16.gmra.mxu0 %v109
  %v150 = vpop.f32.mrf.mxu0
  %v151 = vadd.f32 %v51, %v150
  %v152 = vpop.f32.mrf.mxu0
  %v153 = vadd.f32 %v51, %v152
  %154 = vmatmul.bf16.gmra.mxu0 %v112
  %v155 = vpop.f32.mrf.mxu0
  %v156 = vadd.f32 %v51, %v155
  %v157 = vpop.f32.mrf.mxu0
  %v158 = vadd.f32 %v51, %v157
  %159 = vmatmul.bf16.gmra.mxu0 %v115
  %v160 = vpop.f32.mrf.mxu0
  %v161 = vadd.f32 %v51, %v160
  %v162 = vpop.f32.mrf.mxu0
  %v163 = vadd.f32 %v51, %v162
  %164 = vmatmul.bf16.gmra.mxu0 %v118
  %v165 = vpop.f32.mrf.mxu0
  %v166 = vadd.f32 %v51, %v165
  %v167 = vpop.f32.mrf.mxu0
  %v168 = vadd.f32 %v51, %v167
  %169 = vmatmul.bf16.gmra.mxu0 %v121
  %v170 = vpop.f32.mrf.mxu0
  %v171 = vadd.f32 %v51, %v170
  %v172 = vpop.f32.mrf.mxu0
  %v173 = vadd.f32 %v51, %v172
  %174 = vmatmul.bf16.gmra.mxu0 %v124
  %v175 = vpop.f32.mrf.mxu0
  %v176 = vadd.f32 %v51, %v175
  %v177 = vpop.f32.mrf.mxu0
  %v178 = vadd.f32 %v51, %v177
  %179 = vmatmul.bf16.gmra.mxu0 %v127
  %v180 = vpop.f32.mrf.mxu0
  %v181 = vadd.f32 %v51, %v180
  %v182 = vpop.f32.mrf.mxu0
  %v183 = vadd.f32 %v51, %v182
  %184 = vdwg.mxu0
  %v185 = vmax.f32 %v146, 0.0
  %v186 = vmax.f32 %v148, 0.0
  %v187 = vmax.f32 %v151, 0.0
  %v188 = vmax.f32 %v153, 0.0
  %v189 = vmax.f32 %v156, 0.0
  %v190 = vmax.f32 %v158, 0.0
  %v191 = vmax.f32 %v161, 0.0
  %v192 = vmax.f32 %v163, 0.0
  %v193 = vmax.f32 %v166, 0.0
  %v194 = vmax.f32 %v168, 0.0
  %v195 = vmax.f32 %v171, 0.0
  %v196 = vmax.f32 %v173, 0.0
  %v197 = vmax.f32 %v176, 0.0
  %v198 = vmax.f32 %v178, 0.0
  %v199 = vmax.f32 %v181, 0.0
  %v200 = vmax.f32 %v183, 0.0
  %v201 = vpack.c.bf16 %v185, %v185
  %v202 = vpack.c.bf16 %v186, %v186
  %v203 = vpack.c.bf16 %v187, %v187
  %v204 = vpack.c.bf16 %v188, %v188
  %v205 = vpack.c.bf16 %v189, %v189
  %v206 = vpack.c.bf16 %v190, %v190
  %v207 = vpack.c.bf16 %v191, %v191
  %v208 = vpack.c.bf16 %v192, %v192
  %v209 = vpack.c.bf16 %v193, %v193
  %v210 = vpack.c.bf16 %v194, %v194
  %v211 = vpack.c.bf16 %v195, %v195
  %v212 = vpack.c.bf16 %v196, %v196
  %v213 = vpack.c.bf16 %v197, %v197
  %v214 = vpack.c.bf16 %v198, %v198
  %v215 = vpack.c.bf16 %v199, %v199
  %v216 = vpack.c.bf16 %v200, %v200
  %vm217 = vcmask 257024
  %218 = vst.msk [vmem:[%s7] sm:$0xf] %vm217, %v201
  %219 = vst.msk [vmem:[%s7 + $0x4] sm:$0xf] %vm217, %v202
  %220 = vst.msk [vmem:[%s7 + $0x8] sm:$0xf] %vm217, %v203
  %221 = vst.msk [vmem:[%s7 + $0xc] sm:$0xf] %vm217, %v204
  %222 = vst.msk [vmem:[%s7 + $0x10] sm:$0xf] %vm217, %v205
  %223 = vst.msk [vmem:[%s7 + $0x14] sm:$0xf] %vm217, %v206
  %224 = vst.msk [vmem:[%s7 + $0x18] sm:$0xf] %vm217, %v207
  %225 = vst.msk [vmem:[%s7 + $0x1c] sm:$0xf] %vm217, %v208
  %226 = vst.msk [vmem:[%s7 + $0x20] sm:$0xf] %vm217, %v209
  %227 = vst.msk [vmem:[%s7 + $0x24] sm:$0xf] %vm217, %v210
  %228 = vst.msk [vmem:[%s7 + $0x28] sm:$0xf] %vm217, %v211
  %229 = vst.msk [vmem:[%s7 + $0x2c] sm:$0xf] %vm217, %v212
  %230 = vst.msk [vmem:[%s7 + $0x30] sm:$0xf] %vm217, %v213
  %231 = vst.msk [vmem:[%s7 + $0x34] sm:$0xf] %vm217, %v214
  %232 = vst.msk [vmem:[%s7 + $0x38] sm:$0xf] %vm217, %v215
  %233 = vst.msk [vmem:[%s7 + $0x3c] sm:$0xf] %vm217, %v216
  %v234 = vlaneseq
  %v235 = vshrl.u32 %v234, 7
  %v236 = vadd.s32 %v235, 8
  %v237 = vadd.s32 %v235, 16
  %v238 = vadd.s32 %v235, 24
  %v239 = vadd.s32 %v235, 32
  %v240 = vadd.s32 %v235, 40
  %v241 = vadd.s32 %v235, 48
  %v242 = vadd.s32 %v235, 56
  %v243 = vadd.s32 %v235, 64
  %v244 = vadd.s32 %v235, 72
  %v245 = vadd.s32 %v235, 80
  %v246 = vadd.s32 %v235, 88
  %v247 = vadd.s32 %v235, 96
  %v248 = vadd.s32 %v235, 104
  %v249 = vadd.s32 %v235, 112
  %v250 = vadd.s32 %v235, 120
  %v251 = vand.u32 %v235, 7
  %v252 = vand.u32 %v236, 7
  %v253 = vand.u32 %v237, 7
  %v254 = vand.u32 %v238, 7
  %v255 = vand.u32 %v239, 7
  %v256 = vand.u32 %v240, 7
  %v257 = vand.u32 %v241, 7
  %v258 = vand.u32 %v242, 7
  %v259 = vand.u32 %v243, 7
  %v260 = vand.u32 %v244, 7
  %v261 = vand.u32 %v245, 7
  %v262 = vand.u32 %v246, 7
  %v263 = vand.u32 %v247, 7
  %v264 = vand.u32 %v248, 7
  %v265 = vand.u32 %v249, 7
  %v266 = vand.u32 %v250, 7
  %v267 = vshra.s32 %v235, 3
  %v268 = vshra.s32 %v236, 3
  %v269 = vshra.s32 %v237, 3
  %v270 = vshra.s32 %v238, 3
  %v271 = vshra.s32 %v239, 3
  %v272 = vshra.s32 %v240, 3
  %v273 = vshra.s32 %v241, 3
  %v274 = vshra.s32 %v242, 3
  %v275 = vshra.s32 %v243, 3
  %v276 = vshra.s32 %v244, 3
  %v277 = vshra.s32 %v245, 3
  %v278 = vshra.s32 %v246, 3
  %v279 = vshra.s32 %v247, 3
  %v280 = vshra.s32 %v248, 3
  %v281 = vshra.s32 %v249, 3
  %v282 = vshra.s32 %v250, 3
  %v283 = vand.u32 %v267, 7
  %v284 = vand.u32 %v268, 7
  %v285 = vand.u32 %v269, 7
  %v286 = vand.u32 %v270, 7
  %v287 = vand.u32 %v271, 7
  %v288 = vand.u32 %v272, 7
  %v289 = vand.u32 %v273, 7
  %v290 = vand.u32 %v274, 7
  %v291 = vand.u32 %v275, 7
  %v292 = vand.u32 %v276, 7
  %v293 = vand.u32 %v277, 7
  %v294 = vand.u32 %v278, 7
  %v295 = vand.u32 %v279, 7
  %v296 = vand.u32 %v280, 7
  %v297 = vand.u32 %v281, 7
  %v298 = vand.u32 %v282, 7
  %v299 = vrot.slane %v185, 7
  %v300 = vrot.slane %v186, 7
  %v301 = vrot.slane %v187, 7
  %v302 = vrot.slane %v188, 7
  %v303 = vrot.slane %v189, 7
  %v304 = vrot.slane %v190, 7
  %v305 = vrot.slane %v191, 7
  %v306 = vrot.slane %v192, 7
  %v307 = vrot.slane %v193, 7
  %v308 = vrot.slane %v194, 7
  %v309 = vrot.slane %v195, 7
  %v310 = vrot.slane %v196, 7
  %v311 = vrot.slane %v197, 7
  %v312 = vrot.slane %v198, 7
  %v313 = vrot.slane %v199, 7
  %v314 = vrot.slane %v200, 7
  %vm315 = vcmp.lt.s32.totalorder %v235, 1
  %v316 = vsel %vm315, %v313, %v314
  %v317 = vsel %vm315, %v312, %v313
  %v318 = vsel %vm315, %v311, %v312
  %v319 = vsel %vm315, %v310, %v311
  %v320 = vsel %vm315, %v309, %v310
  %v321 = vsel %vm315, %v308, %v309
  %v322 = vsel %vm315, %v307, %v308
  %v323 = vsel %vm315, %v306, %v307
  %v324 = vsel %vm315, %v305, %v306
  %v325 = vsel %vm315, %v304, %v305
  %v326 = vsel %vm315, %v303, %v304
  %v327 = vsel %vm315, %v302, %v303
  %v328 = vsel %vm315, %v301, %v302
  %v329 = vsel %vm315, %v300, %v301
  %v330 = vsel %vm315, %v299, %v300
  %v331 = vsel %vm315, %v314, %v299
  %vm332 = vcmp.ge.s32.totalorder %v283, 1
  %vm333 = vcmp.ge.s32.totalorder %v284, 1
  %vm334 = vcmp.ge.s32.totalorder %v285, 1
  %vm335 = vcmp.ge.s32.totalorder %v286, 1
  %vm336 = vcmp.ge.s32.totalorder %v287, 1
  %vm337 = vcmp.ge.s32.totalorder %v288, 1
  %vm338 = vcmp.ge.s32.totalorder %v289, 1
  %vm339 = vcmp.ge.s32.totalorder %v290, 1
  %vm340 = vcmp.ge.s32.totalorder %v291, 1
  %vm341 = vcmp.ge.s32.totalorder %v292, 1
  %vm342 = vcmp.ge.s32.totalorder %v293, 1
  %vm343 = vcmp.ge.s32.totalorder %v294, 1
  %vm344 = vcmp.ge.s32.totalorder %v295, 1
  %vm345 = vcmp.ge.s32.totalorder %v296, 1
  %vm346 = vcmp.ge.s32.totalorder %v297, 1
  %vm347 = vcmp.ge.s32.totalorder %v298, 1
  %vm348 = vcmp.ge.s32.totalorder %v251, 1
  %vm349 = vcmp.ge.s32.totalorder %v252, 1
  %vm350 = vcmp.ge.s32.totalorder %v253, 1
  %vm351 = vcmp.ge.s32.totalorder %v254, 1
  %vm352 = vcmp.ge.s32.totalorder %v255, 1
  %vm353 = vcmp.ge.s32.totalorder %v256, 1
  %vm354 = vcmp.ge.s32.totalorder %v257, 1
  %vm355 = vcmp.ge.s32.totalorder %v258, 1
  %vm356 = vcmp.ge.s32.totalorder %v259, 1
  %vm357 = vcmp.ge.s32.totalorder %v260, 1
  %vm358 = vcmp.ge.s32.totalorder %v261, 1
  %vm359 = vcmp.ge.s32.totalorder %v262, 1
  %vm360 = vcmp.ge.s32.totalorder %v263, 1
  %vm361 = vcmp.ge.s32.totalorder %v264, 1
  %vm362 = vcmp.ge.s32.totalorder %v265, 1
  %vm363 = vcmp.ge.s32.totalorder %v266, 1
  %vm364 = vmand %vm332, %vm348
  %vm365 = vmand %vm333, %vm349
  %vm366 = vmand %vm334, %vm350
  %vm367 = vmand %vm335, %vm351
  %vm368 = vmand %vm336, %vm352
  %vm369 = vmand %vm337, %vm353
  %vm370 = vmand %vm338, %vm354
  %vm371 = vmand %vm339, %vm355
  %vm372 = vmand %vm340, %vm356
  %vm373 = vmand %vm341, %vm357
  %vm374 = vmand %vm342, %vm358
  %vm375 = vmand %vm343, %vm359
  %vm376 = vmand %vm344, %vm360
  %vm377 = vmand %vm345, %vm361
  %vm378 = vmand %vm346, %vm362
  %vm379 = vmand %vm347, %vm363
  %v380 = vsel %vm364, 1, 0
  %v381 = vsel %vm365, 1, 0
  %v382 = vsel %vm366, 1, 0
  %v383 = vsel %vm367, 1, 0
  %v384 = vsel %vm368, 1, 0
  %v385 = vsel %vm369, 1, 0
  %v386 = vsel %vm370, 1, 0
  %v387 = vsel %vm371, 1, 0
  %v388 = vsel %vm372, 1, 0
  %v389 = vsel %vm373, 1, 0
  %v390 = vsel %vm374, 1, 0
  %v391 = vsel %vm375, 1, 0
  %v392 = vsel %vm376, 1, 0
  %v393 = vsel %vm377, 1, 0
  %v394 = vsel %vm378, 1, 0
  %v395 = vsel %vm379, 1, 0
  %vm396 = vcmp.eq.s32.totalorder %v380, 1
  %vm397 = vcmp.eq.s32.totalorder %v381, 1
  %vm398 = vcmp.eq.s32.totalorder %v382, 1
  %vm399 = vcmp.eq.s32.totalorder %v383, 1
  %vm400 = vcmp.eq.s32.totalorder %v384, 1
  %vm401 = vcmp.eq.s32.totalorder %v385, 1
  %vm402 = vcmp.eq.s32.totalorder %v386, 1
  %vm403 = vcmp.eq.s32.totalorder %v387, 1
  %vm404 = vcmp.eq.s32.totalorder %v388, 1
  %vm405 = vcmp.eq.s32.totalorder %v389, 1
  %vm406 = vcmp.eq.s32.totalorder %v390, 1
  %vm407 = vcmp.eq.s32.totalorder %v391, 1
  %vm408 = vcmp.eq.s32.totalorder %v392, 1
  %vm409 = vcmp.eq.s32.totalorder %v393, 1
  %vm410 = vcmp.eq.s32.totalorder %v394, 1
  %vm411 = vcmp.eq.s32.totalorder %v395, 1
  %v412 = vsel %vm396, %v316, 0.0
  %v413 = vsel %vm397, %v331, 0.0
  %v414 = vsel %vm398, %v330, 0.0
  %v415 = vsel %vm399, %v329, 0.0
  %v416 = vsel %vm400, %v328, 0.0
  %v417 = vsel %vm401, %v327, 0.0
  %v418 = vsel %vm402, %v326, 0.0
  %v419 = vsel %vm403, %v325, 0.0
  %v420 = vsel %vm404, %v324, 0.0
  %v421 = vsel %vm405, %v323, 0.0
  %v422 = vsel %vm406, %v322, 0.0
  %v423 = vsel %vm407, %v321, 0.0
  %v424 = vsel %vm408, %v320, 0.0
  %v425 = vsel %vm409, %v319, 0.0
  %v426 = vsel %vm410, %v318, 0.0
  %v427 = vsel %vm411, %v317, 0.0
  %v428 = vpack.c.bf16 %v413, %v412
  %v429 = vpack.c.bf16 %v415, %v414
  %v430 = vpack.c.bf16 %v417, %v416
  %v431 = vpack.c.bf16 %v419, %v418
  %v432 = vpack.c.bf16 %v421, %v420
  %v433 = vpack.c.bf16 %v423, %v422
  %v434 = vpack.c.bf16 %v425, %v424
  %v435 = vpack.c.bf16 %v427, %v426
  %v436 = vld [vmem:[%s3] sm:$0xf]
  %v437 = vld [vmem:[%s3 + $0x4] sm:$0xf]
  %v438 = vld [vmem:[%s3 + $0x8] sm:$0xf]
  %v439 = vld [vmem:[%s3 + $0xc] sm:$0xf]
  %v440 = vsel %vm332, 1, 0
  %v441 = vsel %vm333, 1, 0
  %v442 = vsel %vm334, 1, 0
  %v443 = vsel %vm335, 1, 0
  %v444 = vsel %vm336, 1, 0
  %v445 = vsel %vm337, 1, 0
  %v446 = vsel %vm338, 1, 0
  %v447 = vsel %vm339, 1, 0
  %v448 = vsel %vm340, 1, 0
  %v449 = vsel %vm341, 1, 0
  %v450 = vsel %vm342, 1, 0
  %v451 = vsel %vm343, 1, 0
  %v452 = vsel %vm344, 1, 0
  %v453 = vsel %vm345, 1, 0
  %v454 = vsel %vm346, 1, 0
  %v455 = vsel %vm347, 1, 0
  %vm456 = vcmp.eq.s32.totalorder %v440, 1
  %vm457 = vcmp.eq.s32.totalorder %v441, 1
  %vm458 = vcmp.eq.s32.totalorder %v442, 1
  %vm459 = vcmp.eq.s32.totalorder %v443, 1
  %vm460 = vcmp.eq.s32.totalorder %v444, 1
  %vm461 = vcmp.eq.s32.totalorder %v445, 1
  %vm462 = vcmp.eq.s32.totalorder %v446, 1
  %vm463 = vcmp.eq.s32.totalorder %v447, 1
  %vm464 = vcmp.eq.s32.totalorder %v448, 1
  %vm465 = vcmp.eq.s32.totalorder %v449, 1
  %vm466 = vcmp.eq.s32.totalorder %v450, 1
  %vm467 = vcmp.eq.s32.totalorder %v451, 1
  %vm468 = vcmp.eq.s32.totalorder %v452, 1
  %vm469 = vcmp.eq.s32.totalorder %v453, 1
  %vm470 = vcmp.eq.s32.totalorder %v454, 1
  %vm471 = vcmp.eq.s32.totalorder %v455, 1
  %v472 = vsel %vm456, %v200, 0.0
  %v473 = vsel %vm457, %v185, 0.0
  %v474 = vsel %vm458, %v186, 0.0
  %v475 = vsel %vm459, %v187, 0.0
  %v476 = vsel %vm460, %v188, 0.0
  %v477 = vsel %vm461, %v189, 0.0
  %v478 = vsel %vm462, %v190, 0.0
  %v479 = vsel %vm463, %v191, 0.0
  %v480 = vsel %vm464, %v192, 0.0
  %v481 = vsel %vm465, %v193, 0.0
  %v482 = vsel %vm466, %v194, 0.0
  %v483 = vsel %vm467, %v195, 0.0
  %v484 = vsel %vm468, %v196, 0.0
  %v485 = vsel %vm469, %v197, 0.0
  %v486 = vsel %vm470, %v198, 0.0
  %v487 = vsel %vm471, %v199, 0.0
  %v488 = vpack.c.bf16 %v473, %v472
  %v489 = vpack.c.bf16 %v475, %v474
  %v490 = vpack.c.bf16 %v477, %v476
  %v491 = vpack.c.bf16 %v479, %v478
  %v492 = vpack.c.bf16 %v481, %v480
  %v493 = vpack.c.bf16 %v483, %v482
  %v494 = vpack.c.bf16 %v485, %v484
  %v495 = vpack.c.bf16 %v487, %v486
  %s496 = scalar_lea.vmem %s3, 16
  %v497 = vld [vmem:[%s496] sm:$0xf]
  %v498 = vld [vmem:[%s496 + $0x4] sm:$0xf]
  %v499 = vld [vmem:[%s496 + $0x8] sm:$0xf]
  %v500 = vld [vmem:[%s496 + $0xc] sm:$0xf]
  %v505 = vunpack.c.l.b16 %v497
  %v506 = vunpack.c.l.b16 %v498
  %v507 = vunpack.c.l.b16 %v499
  %v508 = vunpack.c.l.b16 %v500
  %v509 = vpack.c.b16 %v506, %v505
  %v510 = vpack.c.b16 %v508, %v507
  %vm513 = vcmask 261120
  %v515 = vsel %vm513, %v488, 0
  %v518 = vsel %vm513, %v489, 0
  %v521 = vsel %vm513, %v490, 0
  %v524 = vsel %vm513, %v491, 0
  %v527 = vsel %vm513, %v492, 0
  %v530 = vsel %vm513, %v493, 0
  %v533 = vsel %vm513, %v494, 0
  %v536 = vsel %vm513, %v495, 0
  %538 = vmatpush.bf16.msra.mxu0 0
  %539 = vmatpush.bf16.msra.mxu0 0
  %540 = vmatpush.bf16.msra.mxu0 0
  %541 = vmatpush.bf16.msra.mxu0 0
  %542 = vmatpush.bf16.msra.mxu0 0
  %543 = vmatpush.bf16.msra.mxu0 0
  %544 = vmatpush.bf16.msra.mxu0 %v510
  %545 = vmatpush.bf16.msra.mxu0 %v509
  %546 = vmatmul.bf16.gmra.mxu0 %v515
  %v547 = vpop.f32.mrf.mxu0
  %v548 = vadd.f32 0.0, %v547
  %v549 = vpop.f32.mrf.mxu0
  %v550 = vadd.f32 0.0, %v549
  %551 = vmatmul.bf16.gmra.mxu0 %v518
  %v552 = vpop.f32.mrf.mxu0
  %v553 = vadd.f32 0.0, %v552
  %v554 = vpop.f32.mrf.mxu0
  %v555 = vadd.f32 0.0, %v554
  %556 = vmatmul.bf16.gmra.mxu0 %v521
  %v557 = vpop.f32.mrf.mxu0
  %v558 = vadd.f32 0.0, %v557
  %v559 = vpop.f32.mrf.mxu0
  %v560 = vadd.f32 0.0, %v559
  %561 = vmatmul.bf16.gmra.mxu0 %v524
  %v562 = vpop.f32.mrf.mxu0
  %v563 = vadd.f32 0.0, %v562
  %v564 = vpop.f32.mrf.mxu0
  %v565 = vadd.f32 0.0, %v564
  %566 = vmatmul.bf16.gmra.mxu0 %v527
  %v567 = vpop.f32.mrf.mxu0
  %v568 = vadd.f32 0.0, %v567
  %v569 = vpop.f32.mrf.mxu0
  %v570 = vadd.f32 0.0, %v569
  %571 = vmatmul.bf16.gmra.mxu0 %v530
  %v572 = vpop.f32.mrf.mxu0
  %v573 = vadd.f32 0.0, %v572
  %v574 = vpop.f32.mrf.mxu0
  %v575 = vadd.f32 0.0, %v574
  %576 = vmatmul.bf16.gmra.mxu0 %v533
  %v577 = vpop.f32.mrf.mxu0
  %v578 = vadd.f32 0.0, %v577
  %v579 = vpop.f32.mrf.mxu0
  %v580 = vadd.f32 0.0, %v579
  %581 = vmatmul.bf16.gmra.mxu0 %v536
  %v582 = vpop.f32.mrf.mxu0
  %v583 = vadd.f32 0.0, %v582
  %v584 = vpop.f32.mrf.mxu0
  %v585 = vadd.f32 0.0, %v584
  %586 = vdwg.mxu0
  %v591 = vunpack.c.l.b16 %v436
  %v592 = vunpack.c.l.b16 %v437
  %v593 = vunpack.c.l.b16 %v438
  %v594 = vunpack.c.l.b16 %v439
  %v595 = vpack.c.b16 %v592, %v591
  %v596 = vpack.c.b16 %v594, %v593
  %v600 = vsel %vm513, %v428, 0
  %v603 = vsel %vm513, %v429, 0
  %v606 = vsel %vm513, %v430, 0
  %v609 = vsel %vm513, %v431, 0
  %v612 = vsel %vm513, %v432, 0
  %v615 = vsel %vm513, %v433, 0
  %v618 = vsel %vm513, %v434, 0
  %v621 = vsel %vm513, %v435, 0
  %623 = vmatpush.bf16.msra.mxu0 0
  %624 = vmatpush.bf16.msra.mxu0 0
  %625 = vmatpush.bf16.msra.mxu0 0
  %626 = vmatpush.bf16.msra.mxu0 0
  %627 = vmatpush.bf16.msra.mxu0 0
  %628 = vmatpush.bf16.msra.mxu0 0
  %629 = vmatpush.bf16.msra.mxu0 %v596
  %630 = vmatpush.bf16.msra.mxu0 %v595
  %631 = vmatmul.bf16.gmra.mxu0 %v600
  %v632 = vpop.f32.mrf.mxu0
  %v633 = vadd.f32 %v548, %v632
  %v634 = vpop.f32.mrf.mxu0
  %v635 = vadd.f32 %v550, %v634
  %636 = vmatmul.bf16.gmra.mxu0 %v603
  %v637 = vpop.f32.mrf.mxu0
  %v638 = vadd.f32 %v553, %v637
  %v639 = vpop.f32.mrf.mxu0
  %v640 = vadd.f32 %v555, %v639
  %641 = vmatmul.bf16.gmra.mxu0 %v606
  %v642 = vpop.f32.mrf.mxu0
  %v643 = vadd.f32 %v558, %v642
  %v644 = vpop.f32.mrf.mxu0
  %v645 = vadd.f32 %v560, %v644
  %646 = vmatmul.bf16.gmra.mxu0 %v609
  %v647 = vpop.f32.mrf.mxu0
  %v648 = vadd.f32 %v563, %v647
  %v649 = vpop.f32.mrf.mxu0
  %v650 = vadd.f32 %v565, %v649
  %651 = vmatmul.bf16.gmra.mxu0 %v612
  %v652 = vpop.f32.mrf.mxu0
  %v653 = vadd.f32 %v568, %v652
  %v654 = vpop.f32.mrf.mxu0
  %v655 = vadd.f32 %v570, %v654
  %656 = vmatmul.bf16.gmra.mxu0 %v615
  %v657 = vpop.f32.mrf.mxu0
  %v658 = vadd.f32 %v573, %v657
  %v659 = vpop.f32.mrf.mxu0
  %v660 = vadd.f32 %v575, %v659
  %661 = vmatmul.bf16.gmra.mxu0 %v618
  %v662 = vpop.f32.mrf.mxu0
  %v663 = vadd.f32 %v578, %v662
  %v664 = vpop.f32.mrf.mxu0
  %v665 = vadd.f32 %v580, %v664
  %666 = vmatmul.bf16.gmra.mxu0 %v621
  %v667 = vpop.f32.mrf.mxu0
  %v668 = vadd.f32 %v583, %v667
  %v669 = vpop.f32.mrf.mxu0
  %v670 = vadd.f32 %v585, %v669
  %671 = vdwg.mxu0
  %v672 = vrot.slane %v185, 1
  %v673 = vrot.slane %v186, 1
  %v674 = vrot.slane %v187, 1
  %v675 = vrot.slane %v188, 1
  %v676 = vrot.slane %v189, 1
  %v677 = vrot.slane %v190, 1
  %v678 = vrot.slane %v191, 1
  %v679 = vrot.slane %v192, 1
  %v680 = vrot.slane %v193, 1
  %v681 = vrot.slane %v194, 1
  %v682 = vrot.slane %v195, 1
  %v683 = vrot.slane %v196, 1
  %v684 = vrot.slane %v197, 1
  %v685 = vrot.slane %v198, 1
  %v686 = vrot.slane %v199, 1
  %v687 = vrot.slane %v200, 1
  %vm688 = vcmp.lt.s32.totalorder %v235, 7
  %v689 = vsel %vm688, %v686, %v687
  %v690 = vsel %vm688, %v685, %v686
  %v691 = vsel %vm688, %v684, %v685
  %v692 = vsel %vm688, %v683, %v684
  %v693 = vsel %vm688, %v682, %v683
  %v694 = vsel %vm688, %v681, %v682
  %v695 = vsel %vm688, %v680, %v681
  %v696 = vsel %vm688, %v679, %v680
  %v697 = vsel %vm688, %v678, %v679
  %v698 = vsel %vm688, %v677, %v678
  %v699 = vsel %vm688, %v676, %v677
  %v700 = vsel %vm688, %v675, %v676
  %v701 = vsel %vm688, %v674, %v675
  %v702 = vsel %vm688, %v673, %v674
  %v703 = vsel %vm688, %v672, %v673
  %v704 = vsel %vm688, %v687, %v672
  %vm705 = vcmp.le.s32.totalorder %v251, 6
  %vm706 = vcmp.le.s32.totalorder %v252, 6
  %vm707 = vcmp.le.s32.totalorder %v253, 6
  %vm708 = vcmp.le.s32.totalorder %v254, 6
  %vm709 = vcmp.le.s32.totalorder %v255, 6
  %vm710 = vcmp.le.s32.totalorder %v256, 6
  %vm711 = vcmp.le.s32.totalorder %v257, 6
  %vm712 = vcmp.le.s32.totalorder %v258, 6
  %vm713 = vcmp.le.s32.totalorder %v259, 6
  %vm714 = vcmp.le.s32.totalorder %v260, 6
  %vm715 = vcmp.le.s32.totalorder %v261, 6
  %vm716 = vcmp.le.s32.totalorder %v262, 6
  %vm717 = vcmp.le.s32.totalorder %v263, 6
  %vm718 = vcmp.le.s32.totalorder %v264, 6
  %vm719 = vcmp.le.s32.totalorder %v265, 6
  %vm720 = vcmp.le.s32.totalorder %v266, 6
  %vm721 = vmand %vm332, %vm705
  %vm722 = vmand %vm333, %vm706
  %vm723 = vmand %vm334, %vm707
  %vm724 = vmand %vm335, %vm708
  %vm725 = vmand %vm336, %vm709
  %vm726 = vmand %vm337, %vm710
  %vm727 = vmand %vm338, %vm711
  %vm728 = vmand %vm339, %vm712
  %vm729 = vmand %vm340, %vm713
  %vm730 = vmand %vm341, %vm714
  %vm731 = vmand %vm342, %vm715
  %vm732 = vmand %vm343, %vm716
  %vm733 = vmand %vm344, %vm717
  %vm734 = vmand %vm345, %vm718
  %vm735 = vmand %vm346, %vm719
  %vm736 = vmand %vm347, %vm720
  %v737 = vsel %vm721, 1, 0
  %v738 = vsel %vm722, 1, 0
  %v739 = vsel %vm723, 1, 0
  %v740 = vsel %vm724, 1, 0
  %v741 = vsel %vm725, 1, 0
  %v742 = vsel %vm726, 1, 0
  %v743 = vsel %vm727, 1, 0
  %v744 = vsel %vm728, 1, 0
  %v745 = vsel %vm729, 1, 0
  %v746 = vsel %vm730, 1, 0
  %v747 = vsel %vm731, 1, 0
  %v748 = vsel %vm732, 1, 0
  %v749 = vsel %vm733, 1, 0
  %v750 = vsel %vm734, 1, 0
  %v751 = vsel %vm735, 1, 0
  %v752 = vsel %vm736, 1, 0
  %vm753 = vcmp.eq.s32.totalorder %v737, 1
  %vm754 = vcmp.eq.s32.totalorder %v738, 1
  %vm755 = vcmp.eq.s32.totalorder %v739, 1
  %vm756 = vcmp.eq.s32.totalorder %v740, 1
  %vm757 = vcmp.eq.s32.totalorder %v741, 1
  %vm758 = vcmp.eq.s32.totalorder %v742, 1
  %vm759 = vcmp.eq.s32.totalorder %v743, 1
  %vm760 = vcmp.eq.s32.totalorder %v744, 1
  %vm761 = vcmp.eq.s32.totalorder %v745, 1
  %vm762 = vcmp.eq.s32.totalorder %v746, 1
  %vm763 = vcmp.eq.s32.totalorder %v747, 1
  %vm764 = vcmp.eq.s32.totalorder %v748, 1
  %vm765 = vcmp.eq.s32.totalorder %v749, 1
  %vm766 = vcmp.eq.s32.totalorder %v750, 1
  %vm767 = vcmp.eq.s32.totalorder %v751, 1
  %vm768 = vcmp.eq.s32.totalorder %v752, 1
  %v769 = vsel %vm753, %v704, 0.0
  %v770 = vsel %vm754, %v703, 0.0
  %v771 = vsel %vm755, %v702, 0.0
  %v772 = vsel %vm756, %v701, 0.0
  %v773 = vsel %vm757, %v700, 0.0
  %v774 = vsel %vm758, %v699, 0.0
  %v775 = vsel %vm759, %v698, 0.0
  %v776 = vsel %vm760, %v697, 0.0
  %v777 = vsel %vm761, %v696, 0.0
  %v778 = vsel %vm762, %v695, 0.0
  %v779 = vsel %vm763, %v694, 0.0
  %v780 = vsel %vm764, %v693, 0.0
  %v781 = vsel %vm765, %v692, 0.0
  %v782 = vsel %vm766, %v691, 0.0
  %v783 = vsel %vm767, %v690, 0.0
  %v784 = vsel %vm768, %v689, 0.0
  %v785 = vpack.c.bf16 %v770, %v769
  %v786 = vpack.c.bf16 %v772, %v771
  %v787 = vpack.c.bf16 %v774, %v773
  %v788 = vpack.c.bf16 %v776, %v775
  %v789 = vpack.c.bf16 %v778, %v777
  %v790 = vpack.c.bf16 %v780, %v779
  %v791 = vpack.c.bf16 %v782, %v781
  %v792 = vpack.c.bf16 %v784, %v783
  %s793 = scalar_lea.vmem %s3, 32
  %v794 = vld [vmem:[%s793] sm:$0xf]
  %v795 = vld [vmem:[%s793 + $0x4] sm:$0xf]
  %v796 = vld [vmem:[%s793 + $0x8] sm:$0xf]
  %v797 = vld [vmem:[%s793 + $0xc] sm:$0xf]
  %v802 = vunpack.c.l.b16 %v794
  %v803 = vunpack.c.l.b16 %v795
  %v804 = vunpack.c.l.b16 %v796
  %v805 = vunpack.c.l.b16 %v797
  %v806 = vpack.c.b16 %v803, %v802
  %v807 = vpack.c.b16 %v805, %v804
  %v811 = vsel %vm513, %v785, 0
  %v814 = vsel %vm513, %v786, 0
  %v817 = vsel %vm513, %v787, 0
  %v820 = vsel %vm513, %v788, 0
  %v823 = vsel %vm513, %v789, 0
  %v826 = vsel %vm513, %v790, 0
  %v829 = vsel %vm513, %v791, 0
  %v832 = vsel %vm513, %v792, 0
  %834 = vmatpush.bf16.msra.mxu0 0
  %835 = vmatpush.bf16.msra.mxu0 0
  %836 = vmatpush.bf16.msra.mxu0 0
  %837 = vmatpush.bf16.msra.mxu0 0
  %838 = vmatpush.bf16.msra.mxu0 0
  %839 = vmatpush.bf16.msra.mxu0 0
  %840 = vmatpush.bf16.msra.mxu0 %v807
  %841 = vmatpush.bf16.msra.mxu0 %v806
  %842 = vmatmul.bf16.gmra.mxu0 %v811
  %v843 = vpop.f32.mrf.mxu0
  %v844 = vadd.f32 0.0, %v843
  %v845 = vpop.f32.mrf.mxu0
  %v846 = vadd.f32 0.0, %v845
  %847 = vmatmul.bf16.gmra.mxu0 %v814
  %v848 = vpop.f32.mrf.mxu0
  %v849 = vadd.f32 0.0, %v848
  %v850 = vpop.f32.mrf.mxu0
  %v851 = vadd.f32 0.0, %v850
  %852 = vmatmul.bf16.gmra.mxu0 %v817
  %v853 = vpop.f32.mrf.mxu0
  %v854 = vadd.f32 0.0, %v853
  %v855 = vpop.f32.mrf.mxu0
  %v856 = vadd.f32 0.0, %v855
  %857 = vmatmul.bf16.gmra.mxu0 %v820
  %v858 = vpop.f32.mrf.mxu0
  %v859 = vadd.f32 0.0, %v858
  %v860 = vpop.f32.mrf.mxu0
  %v861 = vadd.f32 0.0, %v860
  %862 = vmatmul.bf16.gmra.mxu0 %v823
  %v863 = vpop.f32.mrf.mxu0
  %v864 = vadd.f32 0.0, %v863
  %v865 = vpop.f32.mrf.mxu0
  %v866 = vadd.f32 0.0, %v865
  %867 = vmatmul.bf16.gmra.mxu0 %v826
  %v868 = vpop.f32.mrf.mxu0
  %v869 = vadd.f32 0.0, %v868
  %v870 = vpop.f32.mrf.mxu0
  %v871 = vadd.f32 0.0, %v870
  %872 = vmatmul.bf16.gmra.mxu0 %v829
  %v873 = vpop.f32.mrf.mxu0
  %v874 = vadd.f32 0.0, %v873
  %v875 = vpop.f32.mrf.mxu0
  %v876 = vadd.f32 0.0, %v875
  %877 = vmatmul.bf16.gmra.mxu0 %v832
  %v878 = vpop.f32.mrf.mxu0
  %v879 = vadd.f32 0.0, %v878
  %v880 = vpop.f32.mrf.mxu0
  %v881 = vadd.f32 0.0, %v880
  %882 = vdwg.mxu0
  %v883 = vadd.f32 %v633, %v844
  %v884 = vadd.f32 %v635, %v846
  %v885 = vadd.f32 %v638, %v849
  %v886 = vadd.f32 %v640, %v851
  %v887 = vadd.f32 %v643, %v854
  %v888 = vadd.f32 %v645, %v856
  %v889 = vadd.f32 %v648, %v859
  %v890 = vadd.f32 %v650, %v861
  %v891 = vadd.f32 %v653, %v864
  %v892 = vadd.f32 %v655, %v866
  %v893 = vadd.f32 %v658, %v869
  %v894 = vadd.f32 %v660, %v871
  %v895 = vadd.f32 %v663, %v874
  %v896 = vadd.f32 %v665, %v876
  %v897 = vadd.f32 %v668, %v879
  %v898 = vadd.f32 %v670, %v881
  %v899 = vsel %vm348, 1, 0
  %v900 = vsel %vm349, 1, 0
  %v901 = vsel %vm350, 1, 0
  %v902 = vsel %vm351, 1, 0
  %v903 = vsel %vm352, 1, 0
  %v904 = vsel %vm353, 1, 0
  %v905 = vsel %vm354, 1, 0
  %v906 = vsel %vm355, 1, 0
  %v907 = vsel %vm356, 1, 0
  %v908 = vsel %vm357, 1, 0
  %v909 = vsel %vm358, 1, 0
  %v910 = vsel %vm359, 1, 0
  %v911 = vsel %vm360, 1, 0
  %v912 = vsel %vm361, 1, 0
  %v913 = vsel %vm362, 1, 0
  %v914 = vsel %vm363, 1, 0
  %vm915 = vcmp.eq.s32.totalorder %v899, 1
  %vm916 = vcmp.eq.s32.totalorder %v900, 1
  %vm917 = vcmp.eq.s32.totalorder %v901, 1
  %vm918 = vcmp.eq.s32.totalorder %v902, 1
  %vm919 = vcmp.eq.s32.totalorder %v903, 1
  %vm920 = vcmp.eq.s32.totalorder %v904, 1
  %vm921 = vcmp.eq.s32.totalorder %v905, 1
  %vm922 = vcmp.eq.s32.totalorder %v906, 1
  %vm923 = vcmp.eq.s32.totalorder %v907, 1
  %vm924 = vcmp.eq.s32.totalorder %v908, 1
  %vm925 = vcmp.eq.s32.totalorder %v909, 1
  %vm926 = vcmp.eq.s32.totalorder %v910, 1
  %vm927 = vcmp.eq.s32.totalorder %v911, 1
  %vm928 = vcmp.eq.s32.totalorder %v912, 1
  %vm929 = vcmp.eq.s32.totalorder %v913, 1
  %vm930 = vcmp.eq.s32.totalorder %v914, 1
  %v931 = vsel %vm915, %v331, 0.0
  %v932 = vsel %vm916, %v330, 0.0
  %v933 = vsel %vm917, %v329, 0.0
  %v934 = vsel %vm918, %v328, 0.0
  %v935 = vsel %vm919, %v327, 0.0
  %v936 = vsel %vm920, %v326, 0.0
  %v937 = vsel %vm921, %v325, 0.0
  %v938 = vsel %vm922, %v324, 0.0
  %v939 = vsel %vm923, %v323, 0.0
  %v940 = vsel %vm924, %v322, 0.0
  %v941 = vsel %vm925, %v321, 0.0
  %v942 = vsel %vm926, %v320, 0.0
  %v943 = vsel %vm927, %v319, 0.0
  %v944 = vsel %vm928, %v318, 0.0
  %v945 = vsel %vm929, %v317, 0.0
  %v946 = vsel %vm930, %v316, 0.0
  %v947 = vpack.c.bf16 %v932, %v931
  %v948 = vpack.c.bf16 %v934, %v933
  %v949 = vpack.c.bf16 %v936, %v935
  %v950 = vpack.c.bf16 %v938, %v937
  %v951 = vpack.c.bf16 %v940, %v939
  %v952 = vpack.c.bf16 %v942, %v941
  %v953 = vpack.c.bf16 %v944, %v943
  %v954 = vpack.c.bf16 %v946, %v945
  %s955 = scalar_lea.vmem %s3, 48
  %v956 = vld [vmem:[%s955] sm:$0xf]
  %v957 = vld [vmem:[%s955 + $0x4] sm:$0xf]
  %v958 = vld [vmem:[%s955 + $0x8] sm:$0xf]
  %v959 = vld [vmem:[%s955 + $0xc] sm:$0xf]
  %v964 = vunpack.c.l.b16 %v956
  %v965 = vunpack.c.l.b16 %v957
  %v966 = vunpack.c.l.b16 %v958
  %v967 = vunpack.c.l.b16 %v959
  %v968 = vpack.c.b16 %v965, %v964
  %v969 = vpack.c.b16 %v967, %v966
  %v973 = vsel %vm513, %v947, 0
  %v976 = vsel %vm513, %v948, 0
  %v979 = vsel %vm513, %v949, 0
  %v982 = vsel %vm513, %v950, 0
  %v985 = vsel %vm513, %v951, 0
  %v988 = vsel %vm513, %v952, 0
  %v991 = vsel %vm513, %v953, 0
  %v994 = vsel %vm513, %v954, 0
  %996 = vmatpush.bf16.msra.mxu0 0
  %997 = vmatpush.bf16.msra.mxu0 0
  %998 = vmatpush.bf16.msra.mxu0 0
  %999 = vmatpush.bf16.msra.mxu0 0
  %1000 = vmatpush.bf16.msra.mxu0 0
  %1001 = vmatpush.bf16.msra.mxu0 0
  %1002 = vmatpush.bf16.msra.mxu0 %v969
  %1003 = vmatpush.bf16.msra.mxu0 %v968
  %1004 = vmatmul.bf16.gmra.mxu0 %v973
  %v1005 = vpop.f32.mrf.mxu0
  %v1006 = vadd.f32 0.0, %v1005
  %v1007 = vpop.f32.mrf.mxu0
  %v1008 = vadd.f32 0.0, %v1007
  %1009 = vmatmul.bf16.gmra.mxu0 %v976
  %v1010 = vpop.f32.mrf.mxu0
  %v1011 = vadd.f32 0.0, %v1010
  %v1012 = vpop.f32.mrf.mxu0
  %v1013 = vadd.f32 0.0, %v1012
  %1014 = vmatmul.bf16.gmra.mxu0 %v979
  %v1015 = vpop.f32.mrf.mxu0
  %v1016 = vadd.f32 0.0, %v1015
  %v1017 = vpop.f32.mrf.mxu0
  %v1018 = vadd.f32 0.0, %v1017
  %1019 = vmatmul.bf16.gmra.mxu0 %v982
  %v1020 = vpop.f32.mrf.mxu0
  %v1021 = vadd.f32 0.0, %v1020
  %v1022 = vpop.f32.mrf.mxu0
  %v1023 = vadd.f32 0.0, %v1022
  %1024 = vmatmul.bf16.gmra.mxu0 %v985
  %v1025 = vpop.f32.mrf.mxu0
  %v1026 = vadd.f32 0.0, %v1025
  %v1027 = vpop.f32.mrf.mxu0
  %v1028 = vadd.f32 0.0, %v1027
  %1029 = vmatmul.bf16.gmra.mxu0 %v988
  %v1030 = vpop.f32.mrf.mxu0
  %v1031 = vadd.f32 0.0, %v1030
  %v1032 = vpop.f32.mrf.mxu0
  %v1033 = vadd.f32 0.0, %v1032
  %1034 = vmatmul.bf16.gmra.mxu0 %v991
  %v1035 = vpop.f32.mrf.mxu0
  %v1036 = vadd.f32 0.0, %v1035
  %v1037 = vpop.f32.mrf.mxu0
  %v1038 = vadd.f32 0.0, %v1037
  %1039 = vmatmul.bf16.gmra.mxu0 %v994
  %v1040 = vpop.f32.mrf.mxu0
  %v1041 = vadd.f32 0.0, %v1040
  %v1042 = vpop.f32.mrf.mxu0
  %v1043 = vadd.f32 0.0, %v1042
  %1044 = vdwg.mxu0
  %v1045 = vadd.f32 %v883, %v1006
  %v1046 = vadd.f32 %v884, %v1008
  %v1047 = vadd.f32 %v885, %v1011
  %v1048 = vadd.f32 %v886, %v1013
  %v1049 = vadd.f32 %v887, %v1016
  %v1050 = vadd.f32 %v888, %v1018
  %v1051 = vadd.f32 %v889, %v1021
  %v1052 = vadd.f32 %v890, %v1023
  %v1053 = vadd.f32 %v891, %v1026
  %v1054 = vadd.f32 %v892, %v1028
  %v1055 = vadd.f32 %v893, %v1031
  %v1056 = vadd.f32 %v894, %v1033
  %v1057 = vadd.f32 %v895, %v1036
  %v1058 = vadd.f32 %v896, %v1038
  %v1059 = vadd.f32 %v897, %v1041
  %v1060 = vadd.f32 %v898, %v1043
  %s1061 = scalar_lea.vmem %s3, 64
  %v1062 = vld [vmem:[%s1061] sm:$0xf]
  %v1063 = vld [vmem:[%s1061 + $0x4] sm:$0xf]
  %v1064 = vld [vmem:[%s1061 + $0x8] sm:$0xf]
  %v1065 = vld [vmem:[%s1061 + $0xc] sm:$0xf]
  %v1082 = vunpack.c.l.b16 %v201
  %v1083 = vunpack.c.l.b16 %v202
  %v1084 = vunpack.c.l.b16 %v203
  %v1085 = vunpack.c.l.b16 %v204
  %v1086 = vunpack.c.l.b16 %v205
  %v1087 = vunpack.c.l.b16 %v206
  %v1088 = vunpack.c.l.b16 %v207
  %v1089 = vunpack.c.l.b16 %v208
  %v1090 = vunpack.c.l.b16 %v209
  %v1091 = vunpack.c.l.b16 %v210
  %v1092 = vunpack.c.l.b16 %v211
  %v1093 = vunpack.c.l.b16 %v212
  %v1094 = vunpack.c.l.b16 %v213
  %v1095 = vunpack.c.l.b16 %v214
  %v1096 = vunpack.c.l.b16 %v215
  %v1097 = vunpack.c.l.b16 %v216
  %v1098 = vpack.c.b16 %v1083, %v1082
  %v1099 = vpack.c.b16 %v1085, %v1084
  %v1100 = vpack.c.b16 %v1087, %v1086
  %v1101 = vpack.c.b16 %v1089, %v1088
  %v1102 = vpack.c.b16 %v1091, %v1090
  %v1103 = vpack.c.b16 %v1093, %v1092
  %v1104 = vpack.c.b16 %v1095, %v1094
  %v1105 = vpack.c.b16 %v1097, %v1096
  %v1110 = vunpack.c.l.b16 %v1062
  %v1111 = vunpack.c.l.b16 %v1063
  %v1112 = vunpack.c.l.b16 %v1064
  %v1113 = vunpack.c.l.b16 %v1065
  %v1114 = vpack.c.b16 %v1111, %v1110
  %v1115 = vpack.c.b16 %v1113, %v1112
  %v1119 = vsel %vm513, %v1098, 0
  %v1122 = vsel %vm513, %v1099, 0
  %v1125 = vsel %vm513, %v1100, 0
  %v1128 = vsel %vm513, %v1101, 0
  %v1131 = vsel %vm513, %v1102, 0
  %v1134 = vsel %vm513, %v1103, 0
  %v1137 = vsel %vm513, %v1104, 0
  %v1140 = vsel %vm513, %v1105, 0
  %1142 = vmatpush.bf16.msra.mxu0 0
  %1143 = vmatpush.bf16.msra.mxu0 0
  %1144 = vmatpush.bf16.msra.mxu0 0
  %1145 = vmatpush.bf16.msra.mxu0 0
  %1146 = vmatpush.bf16.msra.mxu0 0
  %1147 = vmatpush.bf16.msra.mxu0 0
  %1148 = vmatpush.bf16.msra.mxu0 %v1115
  %1149 = vmatpush.bf16.msra.mxu0 %v1114
  %1150 = vmatmul.bf16.gmra.mxu0 %v1119
  %v1151 = vpop.f32.mrf.mxu0
  %v1152 = vadd.f32 0.0, %v1151
  %v1153 = vpop.f32.mrf.mxu0
  %v1154 = vadd.f32 0.0, %v1153
  %1155 = vmatmul.bf16.gmra.mxu0 %v1122
  %v1156 = vpop.f32.mrf.mxu0
  %v1157 = vadd.f32 0.0, %v1156
  %v1158 = vpop.f32.mrf.mxu0
  %v1159 = vadd.f32 0.0, %v1158
  %1160 = vmatmul.bf16.gmra.mxu0 %v1125
  %v1161 = vpop.f32.mrf.mxu0
  %v1162 = vadd.f32 0.0, %v1161
  %v1163 = vpop.f32.mrf.mxu0
  %v1164 = vadd.f32 0.0, %v1163
  %1165 = vmatmul.bf16.gmra.mxu0 %v1128
  %v1166 = vpop.f32.mrf.mxu0
  %v1167 = vadd.f32 0.0, %v1166
  %v1168 = vpop.f32.mrf.mxu0
  %v1169 = vadd.f32 0.0, %v1168
  %1170 = vmatmul.bf16.gmra.mxu0 %v1131
  %v1171 = vpop.f32.mrf.mxu0
  %v1172 = vadd.f32 0.0, %v1171
  %v1173 = vpop.f32.mrf.mxu0
  %v1174 = vadd.f32 0.0, %v1173
  %1175 = vmatmul.bf16.gmra.mxu0 %v1134
  %v1176 = vpop.f32.mrf.mxu0
  %v1177 = vadd.f32 0.0, %v1176
  %v1178 = vpop.f32.mrf.mxu0
  %v1179 = vadd.f32 0.0, %v1178
  %1180 = vmatmul.bf16.gmra.mxu0 %v1137
  %v1181 = vpop.f32.mrf.mxu0
  %v1182 = vadd.f32 0.0, %v1181
  %v1183 = vpop.f32.mrf.mxu0
  %v1184 = vadd.f32 0.0, %v1183
  %1185 = vmatmul.bf16.gmra.mxu0 %v1140
  %v1186 = vpop.f32.mrf.mxu0
  %v1187 = vadd.f32 0.0, %v1186
  %v1188 = vpop.f32.mrf.mxu0
  %v1189 = vadd.f32 0.0, %v1188
  %1190 = vdwg.mxu0
  %v1191 = vadd.f32 %v1045, %v1152
  %v1192 = vadd.f32 %v1046, %v1154
  %v1193 = vadd.f32 %v1047, %v1157
  %v1194 = vadd.f32 %v1048, %v1159
  %v1195 = vadd.f32 %v1049, %v1162
  %v1196 = vadd.f32 %v1050, %v1164
  %v1197 = vadd.f32 %v1051, %v1167
  %v1198 = vadd.f32 %v1052, %v1169
  %v1199 = vadd.f32 %v1053, %v1172
  %v1200 = vadd.f32 %v1054, %v1174
  %v1201 = vadd.f32 %v1055, %v1177
  %v1202 = vadd.f32 %v1056, %v1179
  %v1203 = vadd.f32 %v1057, %v1182
  %v1204 = vadd.f32 %v1058, %v1184
  %v1205 = vadd.f32 %v1059, %v1187
  %v1206 = vadd.f32 %v1060, %v1189
  %v1207 = vsel %vm705, 1, 0
  %v1208 = vsel %vm706, 1, 0
  %v1209 = vsel %vm707, 1, 0
  %v1210 = vsel %vm708, 1, 0
  %v1211 = vsel %vm709, 1, 0
  %v1212 = vsel %vm710, 1, 0
  %v1213 = vsel %vm711, 1, 0
  %v1214 = vsel %vm712, 1, 0
  %v1215 = vsel %vm713, 1, 0
  %v1216 = vsel %vm714, 1, 0
  %v1217 = vsel %vm715, 1, 0
  %v1218 = vsel %vm716, 1, 0
  %v1219 = vsel %vm717, 1, 0
  %v1220 = vsel %vm718, 1, 0
  %v1221 = vsel %vm719, 1, 0
  %v1222 = vsel %vm720, 1, 0
  %vm1223 = vcmp.eq.s32.totalorder %v1207, 1
  %vm1224 = vcmp.eq.s32.totalorder %v1208, 1
  %vm1225 = vcmp.eq.s32.totalorder %v1209, 1
  %vm1226 = vcmp.eq.s32.totalorder %v1210, 1
  %vm1227 = vcmp.eq.s32.totalorder %v1211, 1
  %vm1228 = vcmp.eq.s32.totalorder %v1212, 1
  %vm1229 = vcmp.eq.s32.totalorder %v1213, 1
  %vm1230 = vcmp.eq.s32.totalorder %v1214, 1
  %vm1231 = vcmp.eq.s32.totalorder %v1215, 1
  %vm1232 = vcmp.eq.s32.totalorder %v1216, 1
  %vm1233 = vcmp.eq.s32.totalorder %v1217, 1
  %vm1234 = vcmp.eq.s32.totalorder %v1218, 1
  %vm1235 = vcmp.eq.s32.totalorder %v1219, 1
  %vm1236 = vcmp.eq.s32.totalorder %v1220, 1
  %vm1237 = vcmp.eq.s32.totalorder %v1221, 1
  %vm1238 = vcmp.eq.s32.totalorder %v1222, 1
  %v1239 = vsel %vm1223, %v703, 0.0
  %v1240 = vsel %vm1224, %v702, 0.0
  %v1241 = vsel %vm1225, %v701, 0.0
  %v1242 = vsel %vm1226, %v700, 0.0
  %v1243 = vsel %vm1227, %v699, 0.0
  %v1244 = vsel %vm1228, %v698, 0.0
  %v1245 = vsel %vm1229, %v697, 0.0
  %v1246 = vsel %vm1230, %v696, 0.0
  %v1247 = vsel %vm1231, %v695, 0.0
  %v1248 = vsel %vm1232, %v694, 0.0
  %v1249 = vsel %vm1233, %v693, 0.0
  %v1250 = vsel %vm1234, %v692, 0.0
  %v1251 = vsel %vm1235, %v691, 0.0
  %v1252 = vsel %vm1236, %v690, 0.0
  %v1253 = vsel %vm1237, %v689, 0.0
  %v1254 = vsel %vm1238, %v704, 0.0
  %v1255 = vpack.c.bf16 %v1240, %v1239
  %v1256 = vpack.c.bf16 %v1242, %v1241
  %v1257 = vpack.c.bf16 %v1244, %v1243
  %v1258 = vpack.c.bf16 %v1246, %v1245
  %v1259 = vpack.c.bf16 %v1248, %v1247
  %v1260 = vpack.c.bf16 %v1250, %v1249
  %v1261 = vpack.c.bf16 %v1252, %v1251
  %v1262 = vpack.c.bf16 %v1254, %v1253
  %s1263 = scalar_lea.vmem %s3, 80
  %v1264 = vld [vmem:[%s1263] sm:$0xf]
  %v1265 = vld [vmem:[%s1263 + $0x4] sm:$0xf]
  %v1266 = vld [vmem:[%s1263 + $0x8] sm:$0xf]
  %v1267 = vld [vmem:[%s1263 + $0xc] sm:$0xf]
  %v1272 = vunpack.c.l.b16 %v1264
  %v1273 = vunpack.c.l.b16 %v1265
  %v1274 = vunpack.c.l.b16 %v1266
  %v1275 = vunpack.c.l.b16 %v1267
  %v1276 = vpack.c.b16 %v1273, %v1272
  %v1277 = vpack.c.b16 %v1275, %v1274
  %v1281 = vsel %vm513, %v1255, 0
  %v1284 = vsel %vm513, %v1256, 0
  %v1287 = vsel %vm513, %v1257, 0
  %v1290 = vsel %vm513, %v1258, 0
  %v1293 = vsel %vm513, %v1259, 0
  %v1296 = vsel %vm513, %v1260, 0
  %v1299 = vsel %vm513, %v1261, 0
  %v1302 = vsel %vm513, %v1262, 0
  %1304 = vmatpush.bf16.msra.mxu0 0
  %1305 = vmatpush.bf16.msra.mxu0 0
  %1306 = vmatpush.bf16.msra.mxu0 0
  %1307 = vmatpush.bf16.msra.mxu0 0
  %1308 = vmatpush.bf16.msra.mxu0 0
  %1309 = vmatpush.bf16.msra.mxu0 0
  %1310 = vmatpush.bf16.msra.mxu0 %v1277
  %1311 = vmatpush.bf16.msra.mxu0 %v1276
  %1312 = vmatmul.bf16.gmra.mxu0 %v1281
  %v1313 = vpop.f32.mrf.mxu0
  %v1314 = vadd.f32 0.0, %v1313
  %v1315 = vpop.f32.mrf.mxu0
  %v1316 = vadd.f32 0.0, %v1315
  %1317 = vmatmul.bf16.gmra.mxu0 %v1284
  %v1318 = vpop.f32.mrf.mxu0
  %v1319 = vadd.f32 0.0, %v1318
  %v1320 = vpop.f32.mrf.mxu0
  %v1321 = vadd.f32 0.0, %v1320
  %1322 = vmatmul.bf16.gmra.mxu0 %v1287
  %v1323 = vpop.f32.mrf.mxu0
  %v1324 = vadd.f32 0.0, %v1323
  %v1325 = vpop.f32.mrf.mxu0
  %v1326 = vadd.f32 0.0, %v1325
  %1327 = vmatmul.bf16.gmra.mxu0 %v1290
  %v1328 = vpop.f32.mrf.mxu0
  %v1329 = vadd.f32 0.0, %v1328
  %v1330 = vpop.f32.mrf.mxu0
  %v1331 = vadd.f32 0.0, %v1330
  %1332 = vmatmul.bf16.gmra.mxu0 %v1293
  %v1333 = vpop.f32.mrf.mxu0
  %v1334 = vadd.f32 0.0, %v1333
  %v1335 = vpop.f32.mrf.mxu0
  %v1336 = vadd.f32 0.0, %v1335
  %1337 = vmatmul.bf16.gmra.mxu0 %v1296
  %v1338 = vpop.f32.mrf.mxu0
  %v1339 = vadd.f32 0.0, %v1338
  %v1340 = vpop.f32.mrf.mxu0
  %v1341 = vadd.f32 0.0, %v1340
  %1342 = vmatmul.bf16.gmra.mxu0 %v1299
  %v1343 = vpop.f32.mrf.mxu0
  %v1344 = vadd.f32 0.0, %v1343
  %v1345 = vpop.f32.mrf.mxu0
  %v1346 = vadd.f32 0.0, %v1345
  %1347 = vmatmul.bf16.gmra.mxu0 %v1302
  %v1348 = vpop.f32.mrf.mxu0
  %v1349 = vadd.f32 0.0, %v1348
  %v1350 = vpop.f32.mrf.mxu0
  %v1351 = vadd.f32 0.0, %v1350
  %1352 = vdwg.mxu0
  %v1353 = vadd.f32 %v1191, %v1314
  %v1354 = vadd.f32 %v1192, %v1316
  %v1355 = vadd.f32 %v1193, %v1319
  %v1356 = vadd.f32 %v1194, %v1321
  %v1357 = vadd.f32 %v1195, %v1324
  %v1358 = vadd.f32 %v1196, %v1326
  %v1359 = vadd.f32 %v1197, %v1329
  %v1360 = vadd.f32 %v1198, %v1331
  %v1361 = vadd.f32 %v1199, %v1334
  %v1362 = vadd.f32 %v1200, %v1336
  %v1363 = vadd.f32 %v1201, %v1339
  %v1364 = vadd.f32 %v1202, %v1341
  %v1365 = vadd.f32 %v1203, %v1344
  %v1366 = vadd.f32 %v1204, %v1346
  %v1367 = vadd.f32 %v1205, %v1349
  %v1368 = vadd.f32 %v1206, %v1351
  %vm1369 = vcmp.le.s32.totalorder %v283, 6
  %vm1370 = vcmp.le.s32.totalorder %v284, 6
  %vm1371 = vcmp.le.s32.totalorder %v285, 6
  %vm1372 = vcmp.le.s32.totalorder %v286, 6
  %vm1373 = vcmp.le.s32.totalorder %v287, 6
  %vm1374 = vcmp.le.s32.totalorder %v288, 6
  %vm1375 = vcmp.le.s32.totalorder %v289, 6
  %vm1376 = vcmp.le.s32.totalorder %v290, 6
  %vm1377 = vcmp.le.s32.totalorder %v291, 6
  %vm1378 = vcmp.le.s32.totalorder %v292, 6
  %vm1379 = vcmp.le.s32.totalorder %v293, 6
  %vm1380 = vcmp.le.s32.totalorder %v294, 6
  %vm1381 = vcmp.le.s32.totalorder %v295, 6
  %vm1382 = vcmp.le.s32.totalorder %v296, 6
  %vm1383 = vcmp.le.s32.totalorder %v297, 6
  %vm1384 = vcmp.le.s32.totalorder %v298, 6
  %vm1385 = vmand %vm1369, %vm348
  %vm1386 = vmand %vm1370, %vm349
  %vm1387 = vmand %vm1371, %vm350
  %vm1388 = vmand %vm1372, %vm351
  %vm1389 = vmand %vm1373, %vm352
  %vm1390 = vmand %vm1374, %vm353
  %vm1391 = vmand %vm1375, %vm354
  %vm1392 = vmand %vm1376, %vm355
  %vm1393 = vmand %vm1377, %vm356
  %vm1394 = vmand %vm1378, %vm357
  %vm1395 = vmand %vm1379, %vm358
  %vm1396 = vmand %vm1380, %vm359
  %vm1397 = vmand %vm1381, %vm360
  %vm1398 = vmand %vm1382, %vm361
  %vm1399 = vmand %vm1383, %vm362
  %vm1400 = vmand %vm1384, %vm363
  %v1401 = vsel %vm1385, 1, 0
  %v1402 = vsel %vm1386, 1, 0
  %v1403 = vsel %vm1387, 1, 0
  %v1404 = vsel %vm1388, 1, 0
  %v1405 = vsel %vm1389, 1, 0
  %v1406 = vsel %vm1390, 1, 0
  %v1407 = vsel %vm1391, 1, 0
  %v1408 = vsel %vm1392, 1, 0
  %v1409 = vsel %vm1393, 1, 0
  %v1410 = vsel %vm1394, 1, 0
  %v1411 = vsel %vm1395, 1, 0
  %v1412 = vsel %vm1396, 1, 0
  %v1413 = vsel %vm1397, 1, 0
  %v1414 = vsel %vm1398, 1, 0
  %v1415 = vsel %vm1399, 1, 0
  %v1416 = vsel %vm1400, 1, 0
  %vm1417 = vcmp.eq.s32.totalorder %v1401, 1
  %vm1418 = vcmp.eq.s32.totalorder %v1402, 1
  %vm1419 = vcmp.eq.s32.totalorder %v1403, 1
  %vm1420 = vcmp.eq.s32.totalorder %v1404, 1
  %vm1421 = vcmp.eq.s32.totalorder %v1405, 1
  %vm1422 = vcmp.eq.s32.totalorder %v1406, 1
  %vm1423 = vcmp.eq.s32.totalorder %v1407, 1
  %vm1424 = vcmp.eq.s32.totalorder %v1408, 1
  %vm1425 = vcmp.eq.s32.totalorder %v1409, 1
  %vm1426 = vcmp.eq.s32.totalorder %v1410, 1
  %vm1427 = vcmp.eq.s32.totalorder %v1411, 1
  %vm1428 = vcmp.eq.s32.totalorder %v1412, 1
  %vm1429 = vcmp.eq.s32.totalorder %v1413, 1
  %vm1430 = vcmp.eq.s32.totalorder %v1414, 1
  %vm1431 = vcmp.eq.s32.totalorder %v1415, 1
  %vm1432 = vcmp.eq.s32.totalorder %v1416, 1
  %v1433 = vsel %vm1417, %v330, 0.0
  %v1434 = vsel %vm1418, %v329, 0.0
  %v1435 = vsel %vm1419, %v328, 0.0
  %v1436 = vsel %vm1420, %v327, 0.0
  %v1437 = vsel %vm1421, %v326, 0.0
  %v1438 = vsel %vm1422, %v325, 0.0
  %v1439 = vsel %vm1423, %v324, 0.0
  %v1440 = vsel %vm1424, %v323, 0.0
  %v1441 = vsel %vm1425, %v322, 0.0
  %v1442 = vsel %vm1426, %v321, 0.0
  %v1443 = vsel %vm1427, %v320, 0.0
  %v1444 = vsel %vm1428, %v319, 0.0
  %v1445 = vsel %vm1429, %v318, 0.0
  %v1446 = vsel %vm1430, %v317, 0.0
  %v1447 = vsel %vm1431, %v316, 0.0
  %v1448 = vsel %vm1432, %v331, 0.0
  %v1449 = vpack.c.bf16 %v1434, %v1433
  %v1450 = vpack.c.bf16 %v1436, %v1435
  %v1451 = vpack.c.bf16 %v1438, %v1437
  %v1452 = vpack.c.bf16 %v1440, %v1439
  %v1453 = vpack.c.bf16 %v1442, %v1441
  %v1454 = vpack.c.bf16 %v1444, %v1443
  %v1455 = vpack.c.bf16 %v1446, %v1445
  %v1456 = vpack.c.bf16 %v1448, %v1447
  %s1457 = scalar_lea.vmem %s3, 96
  %v1458 = vld [vmem:[%s1457] sm:$0xf]
  %v1459 = vld [vmem:[%s1457 + $0x4] sm:$0xf]
  %v1460 = vld [vmem:[%s1457 + $0x8] sm:$0xf]
  %v1461 = vld [vmem:[%s1457 + $0xc] sm:$0xf]
  %v1466 = vunpack.c.l.b16 %v1458
  %v1467 = vunpack.c.l.b16 %v1459
  %v1468 = vunpack.c.l.b16 %v1460
  %v1469 = vunpack.c.l.b16 %v1461
  %v1470 = vpack.c.b16 %v1467, %v1466
  %v1471 = vpack.c.b16 %v1469, %v1468
  %v1475 = vsel %vm513, %v1449, 0
  %v1478 = vsel %vm513, %v1450, 0
  %v1481 = vsel %vm513, %v1451, 0
  %v1484 = vsel %vm513, %v1452, 0
  %v1487 = vsel %vm513, %v1453, 0
  %v1490 = vsel %vm513, %v1454, 0
  %v1493 = vsel %vm513, %v1455, 0
  %v1496 = vsel %vm513, %v1456, 0
  %1498 = vmatpush.bf16.msra.mxu0 0
  %1499 = vmatpush.bf16.msra.mxu0 0
  %1500 = vmatpush.bf16.msra.mxu0 0
  %1501 = vmatpush.bf16.msra.mxu0 0
  %1502 = vmatpush.bf16.msra.mxu0 0
  %1503 = vmatpush.bf16.msra.mxu0 0
  %1504 = vmatpush.bf16.msra.mxu0 %v1471
  %1505 = vmatpush.bf16.msra.mxu0 %v1470
  %1506 = vmatmul.bf16.gmra.mxu0 %v1475
  %v1507 = vpop.f32.mrf.mxu0
  %v1508 = vadd.f32 0.0, %v1507
  %v1509 = vpop.f32.mrf.mxu0
  %v1510 = vadd.f32 0.0, %v1509
  %1511 = vmatmul.bf16.gmra.mxu0 %v1478
  %v1512 = vpop.f32.mrf.mxu0
  %v1513 = vadd.f32 0.0, %v1512
  %v1514 = vpop.f32.mrf.mxu0
  %v1515 = vadd.f32 0.0, %v1514
  %1516 = vmatmul.bf16.gmra.mxu0 %v1481
  %v1517 = vpop.f32.mrf.mxu0
  %v1518 = vadd.f32 0.0, %v1517
  %v1519 = vpop.f32.mrf.mxu0
  %v1520 = vadd.f32 0.0, %v1519
  %1521 = vmatmul.bf16.gmra.mxu0 %v1484
  %v1522 = vpop.f32.mrf.mxu0
  %v1523 = vadd.f32 0.0, %v1522
  %v1524 = vpop.f32.mrf.mxu0
  %v1525 = vadd.f32 0.0, %v1524
  %1526 = vmatmul.bf16.gmra.mxu0 %v1487
  %v1527 = vpop.f32.mrf.mxu0
  %v1528 = vadd.f32 0.0, %v1527
  %v1529 = vpop.f32.mrf.mxu0
  %v1530 = vadd.f32 0.0, %v1529
  %1531 = vmatmul.bf16.gmra.mxu0 %v1490
  %v1532 = vpop.f32.mrf.mxu0
  %v1533 = vadd.f32 0.0, %v1532
  %v1534 = vpop.f32.mrf.mxu0
  %v1535 = vadd.f32 0.0, %v1534
  %1536 = vmatmul.bf16.gmra.mxu0 %v1493
  %v1537 = vpop.f32.mrf.mxu0
  %v1538 = vadd.f32 0.0, %v1537
  %v1539 = vpop.f32.mrf.mxu0
  %v1540 = vadd.f32 0.0, %v1539
  %1541 = vmatmul.bf16.gmra.mxu0 %v1496
  %v1542 = vpop.f32.mrf.mxu0
  %v1543 = vadd.f32 0.0, %v1542
  %v1544 = vpop.f32.mrf.mxu0
  %v1545 = vadd.f32 0.0, %v1544
  %1546 = vdwg.mxu0
  %v1547 = vadd.f32 %v1353, %v1508
  %v1548 = vadd.f32 %v1354, %v1510
  %v1549 = vadd.f32 %v1355, %v1513
  %v1550 = vadd.f32 %v1356, %v1515
  %v1551 = vadd.f32 %v1357, %v1518
  %v1552 = vadd.f32 %v1358, %v1520
  %v1553 = vadd.f32 %v1359, %v1523
  %v1554 = vadd.f32 %v1360, %v1525
  %v1555 = vadd.f32 %v1361, %v1528
  %v1556 = vadd.f32 %v1362, %v1530
  %v1557 = vadd.f32 %v1363, %v1533
  %v1558 = vadd.f32 %v1364, %v1535
  %v1559 = vadd.f32 %v1365, %v1538
  %v1560 = vadd.f32 %v1366, %v1540
  %v1561 = vadd.f32 %v1367, %v1543
  %v1562 = vadd.f32 %v1368, %v1545
  %v1563 = vsel %vm1369, 1, 0
  %v1564 = vsel %vm1370, 1, 0
  %v1565 = vsel %vm1371, 1, 0
  %v1566 = vsel %vm1372, 1, 0
  %v1567 = vsel %vm1373, 1, 0
  %v1568 = vsel %vm1374, 1, 0
  %v1569 = vsel %vm1375, 1, 0
  %v1570 = vsel %vm1376, 1, 0
  %v1571 = vsel %vm1377, 1, 0
  %v1572 = vsel %vm1378, 1, 0
  %v1573 = vsel %vm1379, 1, 0
  %v1574 = vsel %vm1380, 1, 0
  %v1575 = vsel %vm1381, 1, 0
  %v1576 = vsel %vm1382, 1, 0
  %v1577 = vsel %vm1383, 1, 0
  %v1578 = vsel %vm1384, 1, 0
  %vm1579 = vcmp.eq.s32.totalorder %v1563, 1
  %vm1580 = vcmp.eq.s32.totalorder %v1564, 1
  %vm1581 = vcmp.eq.s32.totalorder %v1565, 1
  %vm1582 = vcmp.eq.s32.totalorder %v1566, 1
  %vm1583 = vcmp.eq.s32.totalorder %v1567, 1
  %vm1584 = vcmp.eq.s32.totalorder %v1568, 1
  %vm1585 = vcmp.eq.s32.totalorder %v1569, 1
  %vm1586 = vcmp.eq.s32.totalorder %v1570, 1
  %vm1587 = vcmp.eq.s32.totalorder %v1571, 1
  %vm1588 = vcmp.eq.s32.totalorder %v1572, 1
  %vm1589 = vcmp.eq.s32.totalorder %v1573, 1
  %vm1590 = vcmp.eq.s32.totalorder %v1574, 1
  %vm1591 = vcmp.eq.s32.totalorder %v1575, 1
  %vm1592 = vcmp.eq.s32.totalorder %v1576, 1
  %vm1593 = vcmp.eq.s32.totalorder %v1577, 1
  %vm1594 = vcmp.eq.s32.totalorder %v1578, 1
  %v1595 = vsel %vm1579, %v186, 0.0
  %v1596 = vsel %vm1580, %v187, 0.0
  %v1597 = vsel %vm1581, %v188, 0.0
  %v1598 = vsel %vm1582, %v189, 0.0
  %v1599 = vsel %vm1583, %v190, 0.0
  %v1600 = vsel %vm1584, %v191, 0.0
  %v1601 = vsel %vm1585, %v192, 0.0
  %v1602 = vsel %vm1586, %v193, 0.0
  %v1603 = vsel %vm1587, %v194, 0.0
  %v1604 = vsel %vm1588, %v195, 0.0
  %v1605 = vsel %vm1589, %v196, 0.0
  %v1606 = vsel %vm1590, %v197, 0.0
  %v1607 = vsel %vm1591, %v198, 0.0
  %v1608 = vsel %vm1592, %v199, 0.0
  %v1609 = vsel %vm1593, %v200, 0.0
  %v1610 = vsel %vm1594, %v185, 0.0
  %v1611 = vpack.c.bf16 %v1596, %v1595
  %v1612 = vpack.c.bf16 %v1598, %v1597
  %v1613 = vpack.c.bf16 %v1600, %v1599
  %v1614 = vpack.c.bf16 %v1602, %v1601
  %v1615 = vpack.c.bf16 %v1604, %v1603
  %v1616 = vpack.c.bf16 %v1606, %v1605
  %v1617 = vpack.c.bf16 %v1608, %v1607
  %v1618 = vpack.c.bf16 %v1610, %v1609
  %s1619 = scalar_lea.vmem %s3, 112
  %v1620 = vld [vmem:[%s1619] sm:$0xf]
  %v1621 = vld [vmem:[%s1619 + $0x4] sm:$0xf]
  %v1622 = vld [vmem:[%s1619 + $0x8] sm:$0xf]
  %v1623 = vld [vmem:[%s1619 + $0xc] sm:$0xf]
  %v1628 = vunpack.c.l.b16 %v1620
  %v1629 = vunpack.c.l.b16 %v1621
  %v1630 = vunpack.c.l.b16 %v1622
  %v1631 = vunpack.c.l.b16 %v1623
  %v1632 = vpack.c.b16 %v1629, %v1628
  %v1633 = vpack.c.b16 %v1631, %v1630
  %v1637 = vsel %vm513, %v1611, 0
  %v1640 = vsel %vm513, %v1612, 0
  %v1643 = vsel %vm513, %v1613, 0
  %v1646 = vsel %vm513, %v1614, 0
  %v1649 = vsel %vm513, %v1615, 0
  %v1652 = vsel %vm513, %v1616, 0
  %v1655 = vsel %vm513, %v1617, 0
  %v1658 = vsel %vm513, %v1618, 0
  %1660 = vmatpush.bf16.msra.mxu0 0
  %1661 = vmatpush.bf16.msra.mxu0 0
  %1662 = vmatpush.bf16.msra.mxu0 0
  %1663 = vmatpush.bf16.msra.mxu0 0
  %1664 = vmatpush.bf16.msra.mxu0 0
  %1665 = vmatpush.bf16.msra.mxu0 0
  %1666 = vmatpush.bf16.msra.mxu0 %v1633
  %1667 = vmatpush.bf16.msra.mxu0 %v1632
  %1668 = vmatmul.bf16.gmra.mxu0 %v1637
  %v1669 = vpop.f32.mrf.mxu0
  %v1670 = vadd.f32 0.0, %v1669
  %v1671 = vpop.f32.mrf.mxu0
  %v1672 = vadd.f32 0.0, %v1671
  %1673 = vmatmul.bf16.gmra.mxu0 %v1640
  %v1674 = vpop.f32.mrf.mxu0
  %v1675 = vadd.f32 0.0, %v1674
  %v1676 = vpop.f32.mrf.mxu0
  %v1677 = vadd.f32 0.0, %v1676
  %1678 = vmatmul.bf16.gmra.mxu0 %v1643
  %v1679 = vpop.f32.mrf.mxu0
  %v1680 = vadd.f32 0.0, %v1679
  %v1681 = vpop.f32.mrf.mxu0
  %v1682 = vadd.f32 0.0, %v1681
  %1683 = vmatmul.bf16.gmra.mxu0 %v1646
  %v1684 = vpop.f32.mrf.mxu0
  %v1685 = vadd.f32 0.0, %v1684
  %v1686 = vpop.f32.mrf.mxu0
  %v1687 = vadd.f32 0.0, %v1686
  %1688 = vmatmul.bf16.gmra.mxu0 %v1649
  %v1689 = vpop.f32.mrf.mxu0
  %v1690 = vadd.f32 0.0, %v1689
  %v1691 = vpop.f32.mrf.mxu0
  %v1692 = vadd.f32 0.0, %v1691
  %1693 = vmatmul.bf16.gmra.mxu0 %v1652
  %v1694 = vpop.f32.mrf.mxu0
  %v1695 = vadd.f32 0.0, %v1694
  %v1696 = vpop.f32.mrf.mxu0
  %v1697 = vadd.f32 0.0, %v1696
  %1698 = vmatmul.bf16.gmra.mxu0 %v1655
  %v1699 = vpop.f32.mrf.mxu0
  %v1700 = vadd.f32 0.0, %v1699
  %v1701 = vpop.f32.mrf.mxu0
  %v1702 = vadd.f32 0.0, %v1701
  %1703 = vmatmul.bf16.gmra.mxu0 %v1658
  %v1704 = vpop.f32.mrf.mxu0
  %v1705 = vadd.f32 0.0, %v1704
  %v1706 = vpop.f32.mrf.mxu0
  %v1707 = vadd.f32 0.0, %v1706
  %1708 = vdwg.mxu0
  %v1709 = vadd.f32 %v1547, %v1670
  %v1710 = vadd.f32 %v1548, %v1672
  %v1711 = vadd.f32 %v1549, %v1675
  %v1712 = vadd.f32 %v1550, %v1677
  %v1713 = vadd.f32 %v1551, %v1680
  %v1714 = vadd.f32 %v1552, %v1682
  %v1715 = vadd.f32 %v1553, %v1685
  %v1716 = vadd.f32 %v1554, %v1687
  %v1717 = vadd.f32 %v1555, %v1690
  %v1718 = vadd.f32 %v1556, %v1692
  %v1719 = vadd.f32 %v1557, %v1695
  %v1720 = vadd.f32 %v1558, %v1697
  %v1721 = vadd.f32 %v1559, %v1700
  %v1722 = vadd.f32 %v1560, %v1702
  %v1723 = vadd.f32 %v1561, %v1705
  %v1724 = vadd.f32 %v1562, %v1707
  %vm1725 = vmand %vm1369, %vm705
  %vm1726 = vmand %vm1370, %vm706
  %vm1727 = vmand %vm1371, %vm707
  %vm1728 = vmand %vm1372, %vm708
  %vm1729 = vmand %vm1373, %vm709
  %vm1730 = vmand %vm1374, %vm710
  %vm1731 = vmand %vm1375, %vm711
  %vm1732 = vmand %vm1376, %vm712
  %vm1733 = vmand %vm1377, %vm713
  %vm1734 = vmand %vm1378, %vm714
  %vm1735 = vmand %vm1379, %vm715
  %vm1736 = vmand %vm1380, %vm716
  %vm1737 = vmand %vm1381, %vm717
  %vm1738 = vmand %vm1382, %vm718
  %vm1739 = vmand %vm1383, %vm719
  %vm1740 = vmand %vm1384, %vm720
  %v1741 = vsel %vm1725, 1, 0
  %v1742 = vsel %vm1726, 1, 0
  %v1743 = vsel %vm1727, 1, 0
  %v1744 = vsel %vm1728, 1, 0
  %v1745 = vsel %vm1729, 1, 0
  %v1746 = vsel %vm1730, 1, 0
  %v1747 = vsel %vm1731, 1, 0
  %v1748 = vsel %vm1732, 1, 0
  %v1749 = vsel %vm1733, 1, 0
  %v1750 = vsel %vm1734, 1, 0
  %v1751 = vsel %vm1735, 1, 0
  %v1752 = vsel %vm1736, 1, 0
  %v1753 = vsel %vm1737, 1, 0
  %v1754 = vsel %vm1738, 1, 0
  %v1755 = vsel %vm1739, 1, 0
  %v1756 = vsel %vm1740, 1, 0
  %vm1757 = vcmp.eq.s32.totalorder %v1741, 1
  %vm1758 = vcmp.eq.s32.totalorder %v1742, 1
  %vm1759 = vcmp.eq.s32.totalorder %v1743, 1
  %vm1760 = vcmp.eq.s32.totalorder %v1744, 1
  %vm1761 = vcmp.eq.s32.totalorder %v1745, 1
  %vm1762 = vcmp.eq.s32.totalorder %v1746, 1
  %vm1763 = vcmp.eq.s32.totalorder %v1747, 1
  %vm1764 = vcmp.eq.s32.totalorder %v1748, 1
  %vm1765 = vcmp.eq.s32.totalorder %v1749, 1
  %vm1766 = vcmp.eq.s32.totalorder %v1750, 1
  %vm1767 = vcmp.eq.s32.totalorder %v1751, 1
  %vm1768 = vcmp.eq.s32.totalorder %v1752, 1
  %vm1769 = vcmp.eq.s32.totalorder %v1753, 1
  %vm1770 = vcmp.eq.s32.totalorder %v1754, 1
  %vm1771 = vcmp.eq.s32.totalorder %v1755, 1
  %vm1772 = vcmp.eq.s32.totalorder %v1756, 1
  %v1773 = vsel %vm1757, %v702, 0.0
  %v1774 = vsel %vm1758, %v701, 0.0
  %v1775 = vsel %vm1759, %v700, 0.0
  %v1776 = vsel %vm1760, %v699, 0.0
  %v1777 = vsel %vm1761, %v698, 0.0
  %v1778 = vsel %vm1762, %v697, 0.0
  %v1779 = vsel %vm1763, %v696, 0.0
  %v1780 = vsel %vm1764, %v695, 0.0
  %v1781 = vsel %vm1765, %v694, 0.0
  %v1782 = vsel %vm1766, %v693, 0.0
  %v1783 = vsel %vm1767, %v692, 0.0
  %v1784 = vsel %vm1768, %v691, 0.0
  %v1785 = vsel %vm1769, %v690, 0.0
  %v1786 = vsel %vm1770, %v689, 0.0
  %v1787 = vsel %vm1771, %v704, 0.0
  %v1788 = vsel %vm1772, %v703, 0.0
  %v1789 = vpack.c.bf16 %v1774, %v1773
  %v1790 = vpack.c.bf16 %v1776, %v1775
  %v1791 = vpack.c.bf16 %v1778, %v1777
  %v1792 = vpack.c.bf16 %v1780, %v1779
  %v1793 = vpack.c.bf16 %v1782, %v1781
  %v1794 = vpack.c.bf16 %v1784, %v1783
  %v1795 = vpack.c.bf16 %v1786, %v1785
  %v1796 = vpack.c.bf16 %v1788, %v1787
  %s1797 = scalar_lea.vmem %s3, 128
  %v1798 = vld [vmem:[%s1797] sm:$0xf]
  %v1799 = vld [vmem:[%s1797 + $0x4] sm:$0xf]
  %v1800 = vld [vmem:[%s1797 + $0x8] sm:$0xf]
  %v1801 = vld [vmem:[%s1797 + $0xc] sm:$0xf]
  %v1806 = vunpack.c.l.b16 %v1798
  %v1807 = vunpack.c.l.b16 %v1799
  %v1808 = vunpack.c.l.b16 %v1800
  %v1809 = vunpack.c.l.b16 %v1801
  %v1810 = vpack.c.b16 %v1807, %v1806
  %v1811 = vpack.c.b16 %v1809, %v1808
  %v1815 = vsel %vm513, %v1789, 0
  %v1818 = vsel %vm513, %v1790, 0
  %v1821 = vsel %vm513, %v1791, 0
  %v1824 = vsel %vm513, %v1792, 0
  %v1827 = vsel %vm513, %v1793, 0
  %v1830 = vsel %vm513, %v1794, 0
  %v1833 = vsel %vm513, %v1795, 0
  %v1836 = vsel %vm513, %v1796, 0
  %1838 = vmatpush.bf16.msra.mxu0 0
  %1839 = vmatpush.bf16.msra.mxu0 0
  %1840 = vmatpush.bf16.msra.mxu0 0
  %1841 = vmatpush.bf16.msra.mxu0 0
  %1842 = vmatpush.bf16.msra.mxu0 0
  %1843 = vmatpush.bf16.msra.mxu0 0
  %1844 = vmatpush.bf16.msra.mxu0 %v1811
  %1845 = vmatpush.bf16.msra.mxu0 %v1810
  %1846 = vmatmul.bf16.gmra.mxu0 %v1815
  %v1847 = vpop.f32.mrf.mxu0
  %v1848 = vadd.f32 0.0, %v1847
  %v1849 = vpop.f32.mrf.mxu0
  %v1850 = vadd.f32 0.0, %v1849
  %1851 = vmatmul.bf16.gmra.mxu0 %v1818
  %v1852 = vpop.f32.mrf.mxu0
  %v1853 = vadd.f32 0.0, %v1852
  %v1854 = vpop.f32.mrf.mxu0
  %v1855 = vadd.f32 0.0, %v1854
  %1856 = vmatmul.bf16.gmra.mxu0 %v1821
  %v1857 = vpop.f32.mrf.mxu0
  %v1858 = vadd.f32 0.0, %v1857
  %v1859 = vpop.f32.mrf.mxu0
  %v1860 = vadd.f32 0.0, %v1859
  %1861 = vmatmul.bf16.gmra.mxu0 %v1824
  %v1862 = vpop.f32.mrf.mxu0
  %v1863 = vadd.f32 0.0, %v1862
  %v1864 = vpop.f32.mrf.mxu0
  %v1865 = vadd.f32 0.0, %v1864
  %1866 = vmatmul.bf16.gmra.mxu0 %v1827
  %v1867 = vpop.f32.mrf.mxu0
  %v1868 = vadd.f32 0.0, %v1867
  %v1869 = vpop.f32.mrf.mxu0
  %v1870 = vadd.f32 0.0, %v1869
  %1871 = vmatmul.bf16.gmra.mxu0 %v1830
  %v1872 = vpop.f32.mrf.mxu0
  %v1873 = vadd.f32 0.0, %v1872
  %v1874 = vpop.f32.mrf.mxu0
  %v1875 = vadd.f32 0.0, %v1874
  %1876 = vmatmul.bf16.gmra.mxu0 %v1833
  %v1877 = vpop.f32.mrf.mxu0
  %v1878 = vadd.f32 0.0, %v1877
  %v1879 = vpop.f32.mrf.mxu0
  %v1880 = vadd.f32 0.0, %v1879
  %1881 = vmatmul.bf16.gmra.mxu0 %v1836
  %v1882 = vpop.f32.mrf.mxu0
  %v1883 = vadd.f32 0.0, %v1882
  %v1884 = vpop.f32.mrf.mxu0
  %v1885 = vadd.f32 0.0, %v1884
  %1886 = vdwg.mxu0
  %v1887 = vadd.f32 %v1709, %v1848
  %v1888 = vadd.f32 %v1710, %v1850
  %v1889 = vadd.f32 %v1711, %v1853
  %v1890 = vadd.f32 %v1712, %v1855
  %v1891 = vadd.f32 %v1713, %v1858
  %v1892 = vadd.f32 %v1714, %v1860
  %v1893 = vadd.f32 %v1715, %v1863
  %v1894 = vadd.f32 %v1716, %v1865
  %v1895 = vadd.f32 %v1717, %v1868
  %v1896 = vadd.f32 %v1718, %v1870
  %v1897 = vadd.f32 %v1719, %v1873
  %v1898 = vadd.f32 %v1720, %v1875
  %v1899 = vadd.f32 %v1721, %v1878
  %v1900 = vadd.f32 %v1722, %v1880
  %v1901 = vadd.f32 %v1723, %v1883
  %v1902 = vadd.f32 %v1724, %v1885
  %v1903 = vld [vmem:[%s4] sm:$0x1]
  %v1905 = vperm.slane %v1903, 0
  %v1907 = vadd.f32 %v1887, %v1905
  %v1908 = vadd.f32 %v1888, %v1905
  %v1909 = vadd.f32 %v1889, %v1905
  %v1910 = vadd.f32 %v1890, %v1905
  %v1911 = vadd.f32 %v1891, %v1905
  %v1912 = vadd.f32 %v1892, %v1905
  %v1913 = vadd.f32 %v1893, %v1905
  %v1914 = vadd.f32 %v1894, %v1905
  %v1915 = vadd.f32 %v1895, %v1905
  %v1916 = vadd.f32 %v1896, %v1905
  %v1917 = vadd.f32 %v1897, %v1905
  %v1918 = vadd.f32 %v1898, %v1905
  %v1919 = vadd.f32 %v1899, %v1905
  %v1920 = vadd.f32 %v1900, %v1905
  %v1921 = vadd.f32 %v1901, %v1905
  %v1922 = vadd.f32 %v1902, %v1905
  %v1923 = vmax.f32 %v1907, 0.0
  %v1924 = vmax.f32 %v1908, 0.0
  %v1925 = vmax.f32 %v1909, 0.0
  %v1926 = vmax.f32 %v1910, 0.0
  %v1927 = vmax.f32 %v1911, 0.0
  %v1928 = vmax.f32 %v1912, 0.0
  %v1929 = vmax.f32 %v1913, 0.0
  %v1930 = vmax.f32 %v1914, 0.0
  %v1931 = vmax.f32 %v1915, 0.0
  %v1932 = vmax.f32 %v1916, 0.0
  %v1933 = vmax.f32 %v1917, 0.0
  %v1934 = vmax.f32 %v1918, 0.0
  %v1935 = vmax.f32 %v1919, 0.0
  %v1936 = vmax.f32 %v1920, 0.0
  %v1937 = vmax.f32 %v1921, 0.0
  %v1938 = vmax.f32 %v1922, 0.0
  %v1939 = vpack.c.bf16 %v1924, %v1923
  %v1940 = vpack.c.bf16 %v1926, %v1925
  %v1941 = vpack.c.bf16 %v1928, %v1927
  %v1942 = vpack.c.bf16 %v1930, %v1929
  %v1943 = vpack.c.bf16 %v1932, %v1931
  %v1944 = vpack.c.bf16 %v1934, %v1933
  %v1945 = vpack.c.bf16 %v1936, %v1935
  %v1946 = vpack.c.bf16 %v1938, %v1937
  %v1947 = vld [vmem:[%s5] sm:$0xf]
  %v1948 = vld [vmem:[%s5 + $0x4] sm:$0xf]
  %v1949 = vld [vmem:[%s5 + $0x8] sm:$0xf]
  %v1950 = vld [vmem:[%s5 + $0xc] sm:$0xf]
  %v1951 = vld [vmem:[%s6] sm:$0x1]
  %v1953 = vperm.slane %v1951, 0
  %v1959 = vunpack.c.l.b16 %v1947
  %v1960 = vunpack.c.l.b16 %v1948
  %v1961 = vunpack.c.l.b16 %v1949
  %v1962 = vunpack.c.l.b16 %v1950
  %v1963 = vpack.c.b16 %v1960, %v1959
  %v1964 = vpack.c.b16 %v1962, %v1961
  %v1968 = vsel %vm513, %v1939, 0
  %v1971 = vsel %vm513, %v1940, 0
  %v1974 = vsel %vm513, %v1941, 0
  %v1977 = vsel %vm513, %v1942, 0
  %v1980 = vsel %vm513, %v1943, 0
  %v1983 = vsel %vm513, %v1944, 0
  %v1986 = vsel %vm513, %v1945, 0
  %v1989 = vsel %vm513, %v1946, 0
  %1991 = vmatpush.bf16.msra.mxu0 0
  %1992 = vmatpush.bf16.msra.mxu0 0
  %1993 = vmatpush.bf16.msra.mxu0 0
  %1994 = vmatpush.bf16.msra.mxu0 0
  %1995 = vmatpush.bf16.msra.mxu0 0
  %1996 = vmatpush.bf16.msra.mxu0 0
  %1997 = vmatpush.bf16.msra.mxu0 %v1964
  %1998 = vmatpush.bf16.msra.mxu0 %v1963
  %1999 = vmatmul.bf16.gmra.mxu0 %v1968
  %v2000 = vpop.f32.mrf.mxu0
  %v2001 = vadd.f32 %v1953, %v2000
  %v2002 = vpop.f32.mrf.mxu0
  %v2003 = vadd.f32 %v1953, %v2002
  %2004 = vmatmul.bf16.gmra.mxu0 %v1971
  %v2005 = vpop.f32.mrf.mxu0
  %v2006 = vadd.f32 %v1953, %v2005
  %v2007 = vpop.f32.mrf.mxu0
  %v2008 = vadd.f32 %v1953, %v2007
  %2009 = vmatmul.bf16.gmra.mxu0 %v1974
  %v2010 = vpop.f32.mrf.mxu0
  %v2011 = vadd.f32 %v1953, %v2010
  %v2012 = vpop.f32.mrf.mxu0
  %v2013 = vadd.f32 %v1953, %v2012
  %2014 = vmatmul.bf16.gmra.mxu0 %v1977
  %v2015 = vpop.f32.mrf.mxu0
  %v2016 = vadd.f32 %v1953, %v2015
  %v2017 = vpop.f32.mrf.mxu0
  %v2018 = vadd.f32 %v1953, %v2017
  %2019 = vmatmul.bf16.gmra.mxu0 %v1980
  %v2020 = vpop.f32.mrf.mxu0
  %v2021 = vadd.f32 %v1953, %v2020
  %v2022 = vpop.f32.mrf.mxu0
  %v2023 = vadd.f32 %v1953, %v2022
  %2024 = vmatmul.bf16.gmra.mxu0 %v1983
  %v2025 = vpop.f32.mrf.mxu0
  %v2026 = vadd.f32 %v1953, %v2025
  %v2027 = vpop.f32.mrf.mxu0
  %v2028 = vadd.f32 %v1953, %v2027
  %2029 = vmatmul.bf16.gmra.mxu0 %v1986
  %v2030 = vpop.f32.mrf.mxu0
  %v2031 = vadd.f32 %v1953, %v2030
  %v2032 = vpop.f32.mrf.mxu0
  %v2033 = vadd.f32 %v1953, %v2032
  %2034 = vmatmul.bf16.gmra.mxu0 %v1989
  %v2035 = vpop.f32.mrf.mxu0
  %v2036 = vadd.f32 %v1953, %v2035
  %v2037 = vpop.f32.mrf.mxu0
  %v2038 = vadd.f32 %v1953, %v2037
  %2039 = vdwg.mxu0
  %2040 = vst [vmem:[%s8] sm:$0xff] %v2001
  %2041 = vst [vmem:[%s8 + $0x8] sm:$0xff] %v2003
  %2042 = vst [vmem:[%s8 + $0x10] sm:$0xff] %v2006
  %2043 = vst [vmem:[%s8 + $0x18] sm:$0xff] %v2008
  %2044 = vst [vmem:[%s8 + $0x20] sm:$0xff] %v2011
  %2045 = vst [vmem:[%s8 + $0x28] sm:$0xff] %v2013
  %2046 = vst [vmem:[%s8 + $0x30] sm:$0xff] %v2016
  %2047 = vst [vmem:[%s8 + $0x38] sm:$0xff] %v2018
  %2048 = vst [vmem:[%s8 + $0x40] sm:$0xff] %v2021
  %2049 = vst [vmem:[%s8 + $0x48] sm:$0xff] %v2023
  %2050 = vst [vmem:[%s8 + $0x50] sm:$0xff] %v2026
  %2051 = vst [vmem:[%s8 + $0x58] sm:$0xff] %v2028
  %2052 = vst [vmem:[%s8 + $0x60] sm:$0xff] %v2031
  %2053 = vst [vmem:[%s8 + $0x68] sm:$0xff] %v2033
  %2054 = vst [vmem:[%s8 + $0x70] sm:$0xff] %v2036
  %2055 = vst [vmem:[%s8 + $0x78] sm:$0xff] %v2038
  // Predicated region
  $region30: #{_inference_core.2} parent=0 // pred_check
    _
  $region31: #{_inference_core.2} parent=0 // pred_check_branch
    %2057 = sbr.rel (0) target = $region33
  $region32: #{_inference_core.2} parent=0 // pred_region
    _
  $region33: #{_inference_core.2} parent=0 // pred_fallthru
    _
  // Predicated region
  $region34: #{_inference_core.2} parent=0 // pred_check
    _
  $region35: #{_inference_core.2} parent=0 // pred_check_branch
    %2059 = sbr.rel (0) target = $region37
  $region36: #{_inference_core.2} parent=0 // pred_region
    _
  $region37: #{_inference_core.2} parent=0 // pred_fallthru
    _
  // Predicated region
  $region38: #{_inference_core.2} parent=0 // pred_check
    _
  $region39: #{_inference_core.2} parent=0 // pred_check_branch
    %2061 = sbr.rel (0) target = $region41
  $region40: #{_inference_core.2} parent=0 // pred_region
    _
  $region41: #{_inference_core.2} parent=0 // pred_fallthru
    _
  // Predicated region
  $region42: #{_inference_core.2} parent=0 // pred_check
    _
  $region43: #{_inference_core.2} parent=0 // pred_check_branch
    %2063 = sbr.rel (0) target = $region45
  $region44: #{_inference_core.2} parent=0 // pred_region
    _
  $region45: #{_inference_core.2} parent=0 // pred_fallthru
    _

// kernel: _inference_core.3
$region0: #{_inference_core.3}
  #allocation0 [shape = 'u32[]', space=smem, size = 0x4, offset = 0x4, fixed_abs, tag = 'smem constant byte address 0x4 - core index']
  #allocation1 [shape = 'u32[72,128]{1,0:T(1,128)}', space=vmem, size = 0x9000, scoped, tag = 'internal scratch']
  %s0 = inlined_call_operand.vmem [shape: bf16[4,16,128], index: 0, kind: input, shape index: {}]
  %s1 = inlined_call_operand.vmem [shape: bf16[128,32], index: 1, kind: input, shape index: {}]
  %s2 = inlined_call_operand.vmem [shape: bf16[128,128], index: 2, kind: input, shape index: {}]
  %s3 = inlined_call_operand.vmem [shape: f32[1,128], index: 3, kind: input, shape index: {}, may-alias: {3,5,7}]
  %s4 = inlined_call_operand.vmem [shape: bf16[128,128], index: 4, kind: input, shape index: {}]
  %s5 = inlined_call_operand.vmem [shape: f32[1,128], index: 5, kind: input, shape index: {}, may-alias: {3,5,7}]
  %s6 = inlined_call_operand.vmem [shape: bf16[128,128], index: 6, kind: input, shape index: {}]
  %s7 = inlined_call_operand.vmem [shape: f32[1,128], index: 7, kind: input, shape index: {}, may-alias: {3,5,7}]
  %s8 = inlined_call_operand.vmem [shape: f32[16,128], index: 8, kind: output, shape index: {}]
  %s9 = sld [smem:[#allocation0]]
  $region42: #{_inference_core.3} parent=0
    _
  %s11 = ssub.s32 1, %s9
  %s12 = scalar_select 0, %s11, %s9
  // Predicated region
  $region2: #{_inference_core.3} parent=0 // pred_check
    _
  $region3: #{_inference_core.3} parent=0 // pred_check_branch
    %14 = sbr.rel (0) target = $region5
  $region4: #{_inference_core.3} parent=0 // pred_region
    _
  $region5: #{_inference_core.3} parent=0 // pred_fallthru
    _
  // Predicated region
  $region6: #{_inference_core.3} parent=0 // pred_check
    _
  $region7: #{_inference_core.3} parent=0 // pred_check_branch
    %16 = sbr.rel (0) target = $region9
  $region8: #{_inference_core.3} parent=0 // pred_region
    _
  $region9: #{_inference_core.3} parent=0 // pred_fallthru
    _
  // Predicated region
  $region10: #{_inference_core.3} parent=0 // pred_check
    _
  $region11: #{_inference_core.3} parent=0 // pred_check_branch
    %18 = sbr.rel (0) target = $region13
  $region12: #{_inference_core.3} parent=0 // pred_region
    _
  $region13: #{_inference_core.3} parent=0 // pred_fallthru
    _
  // Predicated region
  $region14: #{_inference_core.3} parent=0 // pred_check
    _
  $region15: #{_inference_core.3} parent=0 // pred_check_branch
    %20 = sbr.rel (0) target = $region17
  $region16: #{_inference_core.3} parent=0 // pred_region
    _
  $region17: #{_inference_core.3} parent=0 // pred_fallthru
    _
  // Predicated region
  $region18: #{_inference_core.3} parent=0 // pred_check
    _
  $region19: #{_inference_core.3} parent=0 // pred_check_branch
    %22 = sbr.rel (0) target = $region21
  $region20: #{_inference_core.3} parent=0 // pred_region
    _
  $region21: #{_inference_core.3} parent=0 // pred_fallthru
    _
  // Predicated region
  $region22: #{_inference_core.3} parent=0 // pred_check
    _
  $region23: #{_inference_core.3} parent=0 // pred_check_branch
    %24 = sbr.rel (0) target = $region25
  $region24: #{_inference_core.3} parent=0 // pred_region
    _
  $region25: #{_inference_core.3} parent=0 // pred_fallthru
    _
  // Predicated region
  $region26: #{_inference_core.3} parent=0 // pred_check
    _
  $region27: #{_inference_core.3} parent=0 // pred_check_branch
    %26 = sbr.rel (0) target = $region29
  $region28: #{_inference_core.3} parent=0 // pred_region
    _
  $region29: #{_inference_core.3} parent=0 // pred_fallthru
    _
  // Predicated region
  $region30: #{_inference_core.3} parent=0 // pred_check
    _
  $region31: #{_inference_core.3} parent=0 // pred_check_branch
    %28 = sbr.rel (0) target = $region33
  $region32: #{_inference_core.3} parent=0 // pred_region
    _
  $region33: #{_inference_core.3} parent=0 // pred_fallthru
    _
  %v30 = vld [vmem:[%s1] sm:$0xf]
  %v31 = vld [vmem:[%s1 + $0x4] sm:$0xf]
  %v32 = vld [vmem:[%s1 + $0x8] sm:$0xf]
  %v33 = vld [vmem:[%s1 + $0xc] sm:$0xf]
  %v34 = vld [vmem:[%s1 + $0x10] sm:$0xf]
  %v35 = vld [vmem:[%s1 + $0x14] sm:$0xf]
  %v36 = vld [vmem:[%s1 + $0x18] sm:$0xf]
  %v37 = vld [vmem:[%s1 + $0x1c] sm:$0xf]
  %v38 = vld [vmem:[%s1 + $0x20] sm:$0xf]
  %v39 = vld [vmem:[%s1 + $0x24] sm:$0xf]
  %v40 = vld [vmem:[%s1 + $0x28] sm:$0xf]
  %v41 = vld [vmem:[%s1 + $0x2c] sm:$0xf]
  %v42 = vld [vmem:[%s1 + $0x30] sm:$0xf]
  %v43 = vld [vmem:[%s1 + $0x34] sm:$0xf]
  %v44 = vld [vmem:[%s1 + $0x38] sm:$0xf]
  %v45 = vld [vmem:[%s1 + $0x3c] sm:$0xf]
  %v46 = vld [vmem:[%s0] sm:$0xf]
  %v47 = vld [vmem:[%s0 + $0x4] sm:$0xf]
  %v50 = vunpack.c.l.b16 %v46
  %v51 = vunpack.c.l.b16 %v47
  %v52 = vpack.c.b16 %v51, %v50
  %v70 = vunpack.c.l.b16 %v30
  %v71 = vunpack.c.l.b16 %v31
  %v72 = vunpack.c.l.b16 %v32
  %v73 = vunpack.c.l.b16 %v33
  %v74 = vunpack.c.l.b16 %v34
  %v75 = vunpack.c.l.b16 %v35
  %v76 = vunpack.c.l.b16 %v36
  %v77 = vunpack.c.l.b16 %v37
  %v78 = vunpack.c.l.b16 %v38
  %v79 = vunpack.c.l.b16 %v39
  %v80 = vunpack.c.l.b16 %v40
  %v81 = vunpack.c.l.b16 %v41
  %v82 = vunpack.c.l.b16 %v42
  %v83 = vunpack.c.l.b16 %v43
  %v84 = vunpack.c.l.b16 %v44
  %v85 = vunpack.c.l.b16 %v45
  %v86 = vpack.c.b16 %v71, %v70
  %v87 = vpack.c.b16 %v73, %v72
  %v88 = vpack.c.b16 %v75, %v74
  %v89 = vpack.c.b16 %v77, %v76
  %v90 = vpack.c.b16 %v79, %v78
  %v91 = vpack.c.b16 %v81, %v80
  %v92 = vpack.c.b16 %v83, %v82
  %v93 = vpack.c.b16 %v85, %v84
  %102 = vmatpush.bf16.msra.mxu0 %v93
  %103 = vmatpush.bf16.msra.mxu0 %v92
  %104 = vmatpush.bf16.msra.mxu0 %v91
  %105 = vmatpush.bf16.msra.mxu0 %v90
  %106 = vmatpush.bf16.msra.mxu0 %v89
  %107 = vmatpush.bf16.msra.mxu0 %v88
  %108 = vmatpush.bf16.msra.mxu0 %v87
  %109 = vmatpush.bf16.msra.mxu0 %v86
  %110 = vmatmul.bf16.gmra.mxu0 %v52
  %v111 = vpop.f32.mrf.mxu0
  %v112 = vadd.f32 0.0, %v111
  %v113 = vpop.f32.mrf.mxu0
  %v114 = vadd.f32 0.0, %v113
  %115 = vdwg.mxu0
  %v116 = vpack.c.bf16 %v114, %v112
  %v117 = vld [vmem:[%s2] sm:$0xf]
  %v118 = vld [vmem:[%s2 + $0x4] sm:$0xf]
  %v119 = vld [vmem:[%s2 + $0x8] sm:$0xf]
  %v120 = vld [vmem:[%s2 + $0xc] sm:$0xf]
  %s121 = scalar_lea.vmem %s0, 8
  %v122 = vld [vmem:[%s121] sm:$0xf]
  %v123 = vld [vmem:[%s121 + $0x4] sm:$0xf]
  %v126 = vunpack.c.l.b16 %v122
  %v127 = vunpack.c.l.b16 %v123
  %v128 = vpack.c.b16 %v127, %v126
  %130 = vmatpush.bf16.msra.mxu0 %v93
  %131 = vmatpush.bf16.msra.mxu0 %v92
  %132 = vmatpush.bf16.msra.mxu0 %v91
  %133 = vmatpush.bf16.msra.mxu0 %v90
  %134 = vmatpush.bf16.msra.mxu0 %v89
  %135 = vmatpush.bf16.msra.mxu0 %v88
  %136 = vmatpush.bf16.msra.mxu0 %v87
  %137 = vmatpush.bf16.msra.mxu0 %v86
  %138 = vmatmul.bf16.gmra.mxu0 %v128
  %v139 = vpop.f32.mrf.mxu0
  %v140 = vadd.f32 0.0, %v139
  %v141 = vpop.f32.mrf.mxu0
  %v142 = vadd.f32 0.0, %v141
  %143 = vdwg.mxu0
  %v144 = vpack.c.bf16 %v142, %v140
  %v145 = vld [vmem:[%s2 + $0x10] sm:$0xf]
  %v146 = vld [vmem:[%s2 + $0x14] sm:$0xf]
  %v147 = vld [vmem:[%s2 + $0x18] sm:$0xf]
  %v148 = vld [vmem:[%s2 + $0x1c] sm:$0xf]
  %v153 = vunpack.c.l.b16 %v145
  %v154 = vunpack.c.l.b16 %v146
  %v155 = vunpack.c.l.b16 %v147
  %v156 = vunpack.c.l.b16 %v148
  %v157 = vpack.c.b16 %v154, %v153
  %v158 = vpack.c.b16 %v156, %v155
  %vm161 = vcmask 261120
  %v163 = vsel %vm161, %v144, 0
  %165 = vmatpush.bf16.msra.mxu0 0
  %166 = vmatpush.bf16.msra.mxu0 0
  %167 = vmatpush.bf16.msra.mxu0 0
  %168 = vmatpush.bf16.msra.mxu0 0
  %169 = vmatpush.bf16.msra.mxu0 0
  %170 = vmatpush.bf16.msra.mxu0 0
  %171 = vmatpush.bf16.msra.mxu0 %v158
  %172 = vmatpush.bf16.msra.mxu0 %v157
  %173 = vmatmul.bf16.gmra.mxu0 %v163
  %v174 = vpop.f32.mrf.mxu0
  %v175 = vadd.f32 0.0, %v174
  %v176 = vpop.f32.mrf.mxu0
  %v177 = vadd.f32 0.0, %v176
  %178 = vdwg.mxu0
  %v183 = vunpack.c.l.b16 %v117
  %v184 = vunpack.c.l.b16 %v118
  %v185 = vunpack.c.l.b16 %v119
  %v186 = vunpack.c.l.b16 %v120
  %v187 = vpack.c.b16 %v184, %v183
  %v188 = vpack.c.b16 %v186, %v185
  %v192 = vsel %vm161, %v116, 0
  %194 = vmatpush.bf16.msra.mxu0 0
  %195 = vmatpush.bf16.msra.mxu0 0
  %196 = vmatpush.bf16.msra.mxu0 0
  %197 = vmatpush.bf16.msra.mxu0 0
  %198 = vmatpush.bf16.msra.mxu0 0
  %199 = vmatpush.bf16.msra.mxu0 0
  %200 = vmatpush.bf16.msra.mxu0 %v188
  %201 = vmatpush.bf16.msra.mxu0 %v187
  %202 = vmatmul.bf16.gmra.mxu0 %v192
  %v203 = vpop.f32.mrf.mxu0
  %v204 = vadd.f32 %v175, %v203
  %v205 = vpop.f32.mrf.mxu0
  %v206 = vadd.f32 %v177, %v205
  %207 = vdwg.mxu0
  %s208 = scalar_lea.vmem %s0, 16
  %v209 = vld [vmem:[%s208] sm:$0xf]
  %v210 = vld [vmem:[%s208 + $0x4] sm:$0xf]
  %v213 = vunpack.c.l.b16 %v209
  %v214 = vunpack.c.l.b16 %v210
  %v215 = vpack.c.b16 %v214, %v213
  %217 = vmatpush.bf16.msra.mxu0 %v93
  %218 = vmatpush.bf16.msra.mxu0 %v92
  %219 = vmatpush.bf16.msra.mxu0 %v91
  %220 = vmatpush.bf16.msra.mxu0 %v90
  %221 = vmatpush.bf16.msra.mxu0 %v89
  %222 = vmatpush.bf16.msra.mxu0 %v88
  %223 = vmatpush.bf16.msra.mxu0 %v87
  %224 = vmatpush.bf16.msra.mxu0 %v86
  %225 = vmatmul.bf16.gmra.mxu0 %v215
  %v226 = vpop.f32.mrf.mxu0
  %v227 = vadd.f32 0.0, %v226
  %v228 = vpop.f32.mrf.mxu0
  %v229 = vadd.f32 0.0, %v228
  %230 = vdwg.mxu0
  %v231 = vpack.c.bf16 %v229, %v227
  %v232 = vld [vmem:[%s2 + $0x20] sm:$0xf]
  %v233 = vld [vmem:[%s2 + $0x24] sm:$0xf]
  %v234 = vld [vmem:[%s2 + $0x28] sm:$0xf]
  %v235 = vld [vmem:[%s2 + $0x2c] sm:$0xf]
  %v240 = vunpack.c.l.b16 %v232
  %v241 = vunpack.c.l.b16 %v233
  %v242 = vunpack.c.l.b16 %v234
  %v243 = vunpack.c.l.b16 %v235
  %v244 = vpack.c.b16 %v241, %v240
  %v245 = vpack.c.b16 %v243, %v242
  %v249 = vsel %vm161, %v231, 0
  %251 = vmatpush.bf16.msra.mxu0 0
  %252 = vmatpush.bf16.msra.mxu0 0
  %253 = vmatpush.bf16.msra.mxu0 0
  %254 = vmatpush.bf16.msra.mxu0 0
  %255 = vmatpush.bf16.msra.mxu0 0
  %256 = vmatpush.bf16.msra.mxu0 0
  %257 = vmatpush.bf16.msra.mxu0 %v245
  %258 = vmatpush.bf16.msra.mxu0 %v244
  %259 = vmatmul.bf16.gmra.mxu0 %v249
  %v260 = vpop.f32.mrf.mxu0
  %v261 = vadd.f32 0.0, %v260
  %v262 = vpop.f32.mrf.mxu0
  %v263 = vadd.f32 0.0, %v262
  %264 = vdwg.mxu0
  %v265 = vadd.f32 %v204, %v261
  %v266 = vadd.f32 %v206, %v263
  %s267 = scalar_lea.vmem %s0, 24
  %v268 = vld [vmem:[%s267] sm:$0xf]
  %v269 = vld [vmem:[%s267 + $0x4] sm:$0xf]
  %v272 = vunpack.c.l.b16 %v268
  %v273 = vunpack.c.l.b16 %v269
  %v274 = vpack.c.b16 %v273, %v272
  %276 = vmatpush.bf16.msra.mxu0 %v93
  %277 = vmatpush.bf16.msra.mxu0 %v92
  %278 = vmatpush.bf16.msra.mxu0 %v91
  %279 = vmatpush.bf16.msra.mxu0 %v90
  %280 = vmatpush.bf16.msra.mxu0 %v89
  %281 = vmatpush.bf16.msra.mxu0 %v88
  %282 = vmatpush.bf16.msra.mxu0 %v87
  %283 = vmatpush.bf16.msra.mxu0 %v86
  %284 = vmatmul.bf16.gmra.mxu0 %v274
  %v285 = vpop.f32.mrf.mxu0
  %v286 = vadd.f32 0.0, %v285
  %v287 = vpop.f32.mrf.mxu0
  %v288 = vadd.f32 0.0, %v287
  %289 = vdwg.mxu0
  %v290 = vpack.c.bf16 %v288, %v286
  %v291 = vld [vmem:[%s2 + $0x30] sm:$0xf]
  %v292 = vld [vmem:[%s2 + $0x34] sm:$0xf]
  %v293 = vld [vmem:[%s2 + $0x38] sm:$0xf]
  %v294 = vld [vmem:[%s2 + $0x3c] sm:$0xf]
  %v299 = vunpack.c.l.b16 %v291
  %v300 = vunpack.c.l.b16 %v292
  %v301 = vunpack.c.l.b16 %v293
  %v302 = vunpack.c.l.b16 %v294
  %v303 = vpack.c.b16 %v300, %v299
  %v304 = vpack.c.b16 %v302, %v301
  %v308 = vsel %vm161, %v290, 0
  %310 = vmatpush.bf16.msra.mxu0 0
  %311 = vmatpush.bf16.msra.mxu0 0
  %312 = vmatpush.bf16.msra.mxu0 0
  %313 = vmatpush.bf16.msra.mxu0 0
  %314 = vmatpush.bf16.msra.mxu0 0
  %315 = vmatpush.bf16.msra.mxu0 0
  %316 = vmatpush.bf16.msra.mxu0 %v304
  %317 = vmatpush.bf16.msra.mxu0 %v303
  %318 = vmatmul.bf16.gmra.mxu0 %v308
  %v319 = vpop.f32.mrf.mxu0
  %v320 = vadd.f32 0.0, %v319
  %v321 = vpop.f32.mrf.mxu0
  %v322 = vadd.f32 0.0, %v321
  %323 = vdwg.mxu0
  %v324 = vadd.f32 %v265, %v320
  %v325 = vadd.f32 %v266, %v322
  %v326 = vld [vmem:[%s3] sm:$0x1]
  %v328 = vperm.slane %v326, 0
  %v330 = vadd.f32 %v324, %v328
  %v331 = vadd.f32 %v325, %v328
  %v332 = vmax.f32 %v330, 0.0
  %v333 = vmax.f32 %v331, 0.0
  %v334 = vpack.c.bf16 %v333, %v332
  %v335 = vld [vmem:[%s4] sm:$0xf]
  %v336 = vld [vmem:[%s4 + $0x4] sm:$0xf]
  %v337 = vld [vmem:[%s4 + $0x8] sm:$0xf]
  %v338 = vld [vmem:[%s4 + $0xc] sm:$0xf]
  %v339 = vld [vmem:[%s4 + $0x10] sm:$0xf]
  %v340 = vld [vmem:[%s4 + $0x14] sm:$0xf]
  %v341 = vld [vmem:[%s4 + $0x18] sm:$0xf]
  %v342 = vld [vmem:[%s4 + $0x1c] sm:$0xf]
  %v343 = vld [vmem:[%s4 + $0x20] sm:$0xf]
  %v344 = vld [vmem:[%s4 + $0x24] sm:$0xf]
  %v345 = vld [vmem:[%s4 + $0x28] sm:$0xf]
  %v346 = vld [vmem:[%s4 + $0x2c] sm:$0xf]
  %v347 = vld [vmem:[%s4 + $0x30] sm:$0xf]
  %v348 = vld [vmem:[%s4 + $0x34] sm:$0xf]
  %v349 = vld [vmem:[%s4 + $0x38] sm:$0xf]
  %v350 = vld [vmem:[%s4 + $0x3c] sm:$0xf]
  %v351 = vld [vmem:[%s5] sm:$0x1]
  %v353 = vperm.slane %v351, 0
  %v371 = vunpack.c.l.b16 %v335
  %v372 = vunpack.c.l.b16 %v336
  %v373 = vunpack.c.l.b16 %v337
  %v374 = vunpack.c.l.b16 %v338
  %v375 = vunpack.c.l.b16 %v339
  %v376 = vunpack.c.l.b16 %v340
  %v377 = vunpack.c.l.b16 %v341
  %v378 = vunpack.c.l.b16 %v342
  %v379 = vunpack.c.l.b16 %v343
  %v380 = vunpack.c.l.b16 %v344
  %v381 = vunpack.c.l.b16 %v345
  %v382 = vunpack.c.l.b16 %v346
  %v383 = vunpack.c.l.b16 %v347
  %v384 = vunpack.c.l.b16 %v348
  %v385 = vunpack.c.l.b16 %v349
  %v386 = vunpack.c.l.b16 %v350
  %v387 = vpack.c.b16 %v372, %v371
  %v388 = vpack.c.b16 %v374, %v373
  %v389 = vpack.c.b16 %v376, %v375
  %v390 = vpack.c.b16 %v378, %v377
  %v391 = vpack.c.b16 %v380, %v379
  %v392 = vpack.c.b16 %v382, %v381
  %v393 = vpack.c.b16 %v384, %v383
  %v394 = vpack.c.b16 %v386, %v385
  %403 = vmatpush.bf16.msra.mxu0 %v394
  %404 = vmatpush.bf16.msra.mxu0 %v393
  %405 = vmatpush.bf16.msra.mxu0 %v392
  %406 = vmatpush.bf16.msra.mxu0 %v391
  %407 = vmatpush.bf16.msra.mxu0 %v390
  %408 = vmatpush.bf16.msra.mxu0 %v389
  %409 = vmatpush.bf16.msra.mxu0 %v388
  %410 = vmatpush.bf16.msra.mxu0 %v387
  %411 = vmatmul.bf16.gmra.mxu0 %v334
  %v412 = vpop.f32.mrf.mxu0
  %v413 = vadd.f32 %v353, %v412
  %v414 = vpop.f32.mrf.mxu0
  %v415 = vadd.f32 %v353, %v414
  %416 = vdwg.mxu0
  %v417 = vmax.f32 %v413, 0.0
  %v418 = vmax.f32 %v415, 0.0
  %v419 = vpack.c.bf16 %v418, %v417
  %v420 = vld [vmem:[%s6] sm:$0xf]
  %v421 = vld [vmem:[%s6 + $0x4] sm:$0xf]
  %v422 = vld [vmem:[%s6 + $0x8] sm:$0xf]
  %v423 = vld [vmem:[%s6 + $0xc] sm:$0xf]
  %v424 = vld [vmem:[%s6 + $0x10] sm:$0xf]
  %v425 = vld [vmem:[%s6 + $0x14] sm:$0xf]
  %v426 = vld [vmem:[%s6 + $0x18] sm:$0xf]
  %v427 = vld [vmem:[%s6 + $0x1c] sm:$0xf]
  %v428 = vld [vmem:[%s6 + $0x20] sm:$0xf]
  %v429 = vld [vmem:[%s6 + $0x24] sm:$0xf]
  %v430 = vld [vmem:[%s6 + $0x28] sm:$0xf]
  %v431 = vld [vmem:[%s6 + $0x2c] sm:$0xf]
  %v432 = vld [vmem:[%s6 + $0x30] sm:$0xf]
  %v433 = vld [vmem:[%s6 + $0x34] sm:$0xf]
  %v434 = vld [vmem:[%s6 + $0x38] sm:$0xf]
  %v435 = vld [vmem:[%s6 + $0x3c] sm:$0xf]
  %v436 = vld [vmem:[%s7] sm:$0x1]
  %v438 = vperm.slane %v436, 0
  %v456 = vunpack.c.l.b16 %v420
  %v457 = vunpack.c.l.b16 %v421
  %v458 = vunpack.c.l.b16 %v422
  %v459 = vunpack.c.l.b16 %v423
  %v460 = vunpack.c.l.b16 %v424
  %v461 = vunpack.c.l.b16 %v425
  %v462 = vunpack.c.l.b16 %v426
  %v463 = vunpack.c.l.b16 %v427
  %v464 = vunpack.c.l.b16 %v428
  %v465 = vunpack.c.l.b16 %v429
  %v466 = vunpack.c.l.b16 %v430
  %v467 = vunpack.c.l.b16 %v431
  %v468 = vunpack.c.l.b16 %v432
  %v469 = vunpack.c.l.b16 %v433
  %v470 = vunpack.c.l.b16 %v434
  %v471 = vunpack.c.l.b16 %v435
  %v472 = vpack.c.b16 %v457, %v456
  %v473 = vpack.c.b16 %v459, %v458
  %v474 = vpack.c.b16 %v461, %v460
  %v475 = vpack.c.b16 %v463, %v462
  %v476 = vpack.c.b16 %v465, %v464
  %v477 = vpack.c.b16 %v467, %v466
  %v478 = vpack.c.b16 %v469, %v468
  %v479 = vpack.c.b16 %v471, %v470
  %488 = vmatpush.bf16.msra.mxu0 %v479
  %489 = vmatpush.bf16.msra.mxu0 %v478
  %490 = vmatpush.bf16.msra.mxu0 %v477
  %491 = vmatpush.bf16.msra.mxu0 %v476
  %492 = vmatpush.bf16.msra.mxu0 %v475
  %493 = vmatpush.bf16.msra.mxu0 %v474
  %494 = vmatpush.bf16.msra.mxu0 %v473
  %495 = vmatpush.bf16.msra.mxu0 %v472
  %496 = vmatmul.bf16.gmra.mxu0 %v419
  %v497 = vpop.f32.mrf.mxu0
  %v498 = vadd.f32 %v438, %v497
  %v499 = vpop.f32.mrf.mxu0
  %v500 = vadd.f32 %v438, %v499
  %501 = vdwg.mxu0
  %502 = vst [vmem:[%s8] sm:$0xff] %v498
  %503 = vst [vmem:[%s8 + $0x8] sm:$0xff] %v500
  // Predicated region
  $region34: #{_inference_core.3} parent=0 // pred_check
    _
  $region35: #{_inference_core.3} parent=0 // pred_check_branch
    %505 = sbr.rel (0) target = $region37
  $region36: #{_inference_core.3} parent=0 // pred_region
    _
  $region37: #{_inference_core.3} parent=0 // pred_fallthru
    _
  // Predicated region
  $region38: #{_inference_core.3} parent=0 // pred_check
    _
  $region39: #{_inference_core.3} parent=0 // pred_check_branch
    %507 = sbr.rel (0) target = $region41
  $region40: #{_inference_core.3} parent=0 // pred_region
    _
  $region41: #{_inference_core.3} parent=0 // pred_fallthru
    _

</llo_original>
